<compile_context>
chip_gen: v6e
topology: v6e:2x2x1
jax: 0.10.0
libtpu: 0.0.40
codegen_flags: <defaults>
</compile_context>

<pallas_src>
import numpy as np
import jax
import jax.numpy as jnp
from jax import lax
from jax.experimental import pallas as pl
from jax.experimental.pallas import tpu as pltpu


def _round_up(x, m):
    return (x + m - 1) // m * m


# ----------------------------- Pallas kernel ------------------------------ #
def _biaffine_kernel(pred_idx_ref,            # [B, P_pad] int32 (scalar prefetch, SMEM)
                     span_ref,                # [1, S_pad, D_pad]   per-batch-item block
                     wpff_ref, bpff_ref,      # [D_pad, D_pad], [1, D_pad]
                     waff_ref, baff_ref,      # [D_pad, D_pad], [1, D_pad]
                     wp_ref, wa_ref,          # [1, D_pad] each (unary score rows)
                     w2p_ref, w2a_ref,        # [1, 1, D_pad]       per-label slabs
                     w1_ref,                  # [1, D_pad, D_pad]   per-label slab
                     bvec_ref,                # [L] f32 in SMEM (bias per label)
                     out_ref,                 # [1, 1, P_pad, S_pad]
                     pred_sc, ps_sc, as_sc):  # VMEM scratch (persist across labels)
    b = pl.program_id(0)
    l = pl.program_id(1)
    span = span_ref[0]                        # [S_pad, D_pad]
    P_pad = pred_sc.shape[0]
    S_pad = span.shape[0]

    # ---- per-batch-item work: gather + FFNN + unary scores (only at l==0) ----
    @pl.when(l == 0)
    def _():
        # On-device gather of predicate rows as a one-hot MXU matmul.
        col = lax.broadcasted_iota(jnp.int32, (P_pad, S_pad), 1)
        row = lax.broadcasted_iota(jnp.int32, (P_pad, S_pad), 0)
        tgt = jnp.zeros((P_pad, S_pad), jnp.int32)
        for p in range(P_pad):                # static unroll, P_pad is small
            tgt = jnp.where(row == p, pred_idx_ref[b, p], tgt)
        sel = (col == tgt).astype(span.dtype)
        pred_g = jnp.dot(sel, span, preferred_element_type=jnp.float32)
        pred_sc[...] = pred_g                 # [P_pad, D_pad] f32

        # Last-layer FFNN + unary scores (dropout omitted, see TODO above).
        h_p = jnp.maximum(
            jnp.dot(pred_g.astype(span.dtype), wpff_ref[...],
                    preferred_element_type=jnp.float32) + bpff_ref[...], 0.0)
        # predicate unary score via VPU mul + XLU lane-reduce (no N=1 matmul)
        ps_sc[...] = jnp.sum(h_p * wp_ref[...], axis=-1, keepdims=True)

        h_a = jnp.maximum(
            jnp.dot(span, waff_ref[...],
                    preferred_element_type=jnp.float32) + baff_ref[...], 0.0)
        wa = wa_ref[...]
        # argument unary score directly as a lane-oriented row [1, S_pad]
        as_sc[...] = lax.dot_general(
            wa, h_a.astype(wa.dtype), (((1,), (1,)), ((), ())),
            preferred_element_type=jnp.float32)

    # ---- per-label bilinear + rank-1 additive terms --------------------------
    pred_g = pred_sc[...]                     # [P_pad, D_pad] f32
    w1 = w1_ref[0]                            # [D_pad, D_pad]
    tmp = jnp.dot(pred_g.astype(w1.dtype), w1,
                  preferred_element_type=jnp.float32)            # [P_pad, D_pad]
    bil = lax.dot_general(tmp.astype(span.dtype), span,
                          (((1,), (1,)), ((), ())),
                          preferred_element_type=jnp.float32)    # [P_pad, S_pad]

    # u[p] = pred[p]@W2_top[:,l] + pscore[p] + b[l]   -> [P_pad, 1]
    u = (jnp.sum(pred_g * w2p_ref[0], axis=-1, keepdims=True)
         + ps_sc[...] + bvec_ref[l])
    # v[s] = span[s]@W2_bot[:,l] + ascore[s]          -> [1, S_pad]
    v = (lax.dot_general(w2a_ref[0], span, (((1,), (1,)), ((), ())),
                         preferred_element_type=jnp.float32)
         + as_sc[...])

    scores = bil + u + v
    is_last = l == pl.num_programs(1) - 1     # combine_score[:, -1] = 0
    out_ref[0, 0] = jnp.where(is_last, jnp.zeros_like(scores), scores)


# ----------------------------- pallas_call wrapper ------------------------- #
def _biaffine_scores_call(pred_idx, span_pad, kparams):
    """pred_idx: [B, P_pad] int32.  span_pad: [B, S_pad, D_pad].
    Returns padded scores [B, L, P_pad, S_pad] float32."""
    B, S_pad, D_pad = span_pad.shape
    P_pad = pred_idx.shape[1]
    (wpff, bpff, waff, baff, wp, wa, w2p, w2a, w1, bvec) = kparams
    L = w1.shape[0]

    def fixed(shape):                          # weight stays VMEM-resident
        return pl.BlockSpec(shape, lambda bb, ll, *_: (0,) * len(shape))

    grid_spec = pltpu.PrefetchScalarGridSpec(
        num_scalar_prefetch=1,
        grid=(B, L),
        in_specs=[
            pl.BlockSpec((1, S_pad, D_pad), lambda bb, ll, *_: (bb, 0, 0)),  # span
            fixed((D_pad, D_pad)), fixed((1, D_pad)),                        # pred FFNN
            fixed((D_pad, D_pad)), fixed((1, D_pad)),                        # arg FFNN
            fixed((1, D_pad)), fixed((1, D_pad)),                            # W_p, W_a rows
            pl.BlockSpec((1, 1, D_pad), lambda bb, ll, *_: (ll, 0, 0)),      # W2_top^T[l]
            pl.BlockSpec((1, 1, D_pad), lambda bb, ll, *_: (ll, 0, 0)),      # W2_bot^T[l]
            pl.BlockSpec((1, D_pad, D_pad), lambda bb, ll, *_: (ll, 0, 0)),  # W1[l]
            pl.BlockSpec(memory_space=pltpu.MemorySpace.SMEM),               # b (per label)
        ],
        out_specs=pl.BlockSpec((1, 1, P_pad, S_pad),
                               lambda bb, ll, *_: (bb, ll, 0, 0)),
        scratch_shapes=[
            pltpu.VMEM((P_pad, D_pad), jnp.float32),   # gathered predicate reprs
            pltpu.VMEM((P_pad, 1), jnp.float32),       # predicate unary score
            pltpu.VMEM((1, S_pad), jnp.float32),       # argument unary score row
        ],
    )

    flops = int(B * L * 2 * P_pad * D_pad * (D_pad + S_pad)      # bilinear
                + B * 2 * D_pad * D_pad * (P_pad + S_pad)        # FFNN
                + B * 2 * P_pad * S_pad * D_pad)                 # gather
    bytes_accessed = int(
        sum(int(x.size) * x.dtype.itemsize
            for x in (span_pad, wpff, bpff, waff, baff, wp, wa, w2p, w2a, w1))
        + B * L * P_pad * S_pad * 4)

    return pl.pallas_call(
        _biaffine_kernel,
        out_shape=jax.ShapeDtypeStruct((B, L, P_pad, S_pad), jnp.float32),
        grid_spec=grid_spec,
        compiler_params=pltpu.CompilerParams(
            dimension_semantics=("parallel", "arbitrary"),
            vmem_limit_bytes=32 * 1024 * 1024),
        cost_estimate=pl.CostEstimate(flops=flops, transcendentals=0,
                                      bytes_accessed=bytes_accessed),
    )(pred_idx, span_pad, wpff, bpff, waff, baff, wp, wa, w2p, w2a, w1, bvec)


# ----------------------------- parameter setup ----------------------------- #
def init_params(key, num_labels, feature_dim, fflayers=2):
    D, L = feature_dim, num_labels
    ks = list(jax.random.split(key, 4 * fflayers + 5))
    nxt = iter(ks).__next__
    return {
        "p_w": [0.1 * jax.random.normal(nxt(), (D, D), jnp.float32) for _ in range(fflayers)],
        "p_b": [0.1 * jax.random.normal(nxt(), (D,), jnp.float32) for _ in range(fflayers)],
        "a_w": [0.1 * jax.random.normal(nxt(), (D, D), jnp.float32) for _ in range(fflayers)],
        "a_b": [0.1 * jax.random.normal(nxt(), (D,), jnp.float32) for _ in range(fflayers)],
        "Wp": 0.1 * jax.random.normal(nxt(), (1, D), jnp.float32),   # nn.Linear(D, 1, bias=False)
        "Wa": 0.1 * jax.random.normal(nxt(), (1, D), jnp.float32),
        "W1": 0.1 * jax.random.normal(nxt(), (L, D, D), jnp.float32),
        "W2": 0.1 * jax.random.normal(nxt(), (2 * D, L), jnp.float32),
        "b":  0.1 * jax.random.normal(nxt(), (1, L), jnp.float32),
    }


def build_kernel_params(params, d_pad, compute_dtype):
    """Pad / transpose parameters to 128-lane-aligned kernel operands."""
    W1, W2, b = params["W1"], params["W2"], params["b"]
    L, D, _ = W1.shape
    dt = compute_dtype

    def pad2(x, r, c):
        return jnp.zeros((r, c), jnp.float32).at[:x.shape[0], :x.shape[1]].set(x)

    wpff = pad2(params["p_w"][-1].T, d_pad, d_pad).astype(dt)     # x @ W.T == x @ wpff
    bpff = pad2(params["p_b"][-1][None, :], 1, d_pad).astype(dt)
    waff = pad2(params["a_w"][-1].T, d_pad, d_pad).astype(dt)
    baff = pad2(params["a_b"][-1][None, :], 1, d_pad).astype(dt)
    wp = pad2(params["Wp"], 1, d_pad).astype(dt)
    wa = pad2(params["Wa"], 1, d_pad).astype(dt)
    w2p = (jnp.zeros((L, 1, d_pad), jnp.float32)
           .at[:, 0, :D].set(W2[:D, :].T).astype(dt))             # per-label W2_top^T row
    w2a = (jnp.zeros((L, 1, d_pad), jnp.float32)
           .at[:, 0, :D].set(W2[D:, :].T).astype(dt))             # per-label W2_bot^T row
    w1p = (jnp.zeros((L, d_pad, d_pad), jnp.float32)
           .at[:, :D, :D].set(W1).astype(dt))
    bvec = b[0].astype(jnp.float32)                               # [L], SMEM
    return (wpff, bpff, waff, baff, wp, wa, w2p, w2a, w1p, bvec)


# ------------------------------- full forward ------------------------------ #
def biaffine_forward(params, span_repr, predicates, labels, len_info,
                     *, compute_dtype=jnp.float32):
    """Mirrors Biaffine.forward.  All score math runs in ONE gridded Pallas
    kernel; only the ragged assembly of valid rows (data-dependent sizes, as
    in the reference's batch loop) stays as thin glue using the small integer
    metadata.  Set compute_dtype=jnp.bfloat16 for the bf16-input / f32-accum
    path on v6e/v7x."""
    B, num_spans, D = span_repr.shape
    L = params["W1"].shape[0]
    max_preds = predicates.shape[1]
    d_pad = _round_up(D, 128)
    s_pad = _round_up(num_spans, 128)
    p_pad = _round_up(max_preds, 8)

    # Small integer metadata is needed host-side anyway for the ragged output;
    # the large span_repr tensor never leaves the device.
    pred_np = np.asarray(predicates)
    len_np = np.asarray(len_info)
    lab_np = np.asarray(labels)

    pred_idx = np.zeros((B, p_pad), np.int32)
    n_preds = np.zeros((B,), np.int32)
    for i in range(B):
        pi = pred_np[i][pred_np[i] != -1]
        n_preds[i] = pi.size
        pred_idx[i, :pi.size] = pi

    span_pad = (jnp.zeros((B, s_pad, d_pad), compute_dtype)
                .at[:, :num_spans, :D].set(jnp.asarray(span_repr, compute_dtype)))

    kparams = build_kernel_params(params, d_pad, compute_dtype)
    scores = _biaffine_scores_call(jnp.asarray(pred_idx), span_pad, kparams)
    # scores: [B, L, P_pad, S_pad] f32; last label already zeroed in-kernel.

    insts, labs = [], []
    for i in range(B):
        P_i, S_i = int(n_preds[i]), int(len_np[i])
        if P_i == 0:
            continue
        blk = scores[i, :, :P_i, :S_i].reshape(L, P_i * S_i).T     # [P_i*S_i, L]
        insts.append(blk)
        labs.append(jnp.asarray(lab_np[i][lab_np[i] != -1], jnp.int32))
    return jnp.concatenate(insts, axis=0), jnp.concatenate(labs, axis=0)


# --------------------------- pure-JAX reference ----------------------------- #
def biaffine_reference(params, span_repr, predicates, labels, len_info):
    W1, W2, b = params["W1"], params["W2"], params["b"]
    L, D, _ = W1.shape
    span_np = np.asarray(span_repr)
    pred_np = np.asarray(predicates)
    lab_np = np.asarray(labels)
    len_np = np.asarray(len_info)

    insts, labs = [], []
    for i in range(lab_np.shape[0]):
        p_idx = pred_np[i][pred_np[i] != -1]
        if p_idx.size == 0:
            continue
        real_labels = lab_np[i][lab_np[i] != -1]
        pred_repr = jnp.asarray(span_np[i][p_idx], jnp.float32)
        span_trunc = jnp.asarray(span_np[i][: int(len_np[i])], jnp.float32)
        P, S = pred_repr.shape[0], span_trunc.shape[0]

        h_p = jnp.maximum(pred_repr @ params["p_w"][-1].T + params["p_b"][-1], 0.0)
        h_a = jnp.maximum(span_trunc @ params["a_w"][-1].T + params["a_b"][-1], 0.0)
        pscore = h_p @ params["Wp"].T                       # [P, 1]
        ascore = (h_a @ params["Wa"].T).reshape(1, -1)      # [1, S]
        p_a = (pscore + ascore).reshape(-1, 1)              # [P*S, 1]

        first = jnp.matmul(jnp.matmul(pred_repr, W1), span_trunc.T)    # [L, P, S]
        first = first.reshape(L, P * S).T                              # [P*S, L]
        sec = (pred_repr @ W2[:D, :])[:, None, :] + (span_trunc @ W2[D:, :])[None, :, :]
        second = sec.reshape(P * S, L)
        combine = first + second + b + p_a
        combine = combine.at[:, -1].set(0.0)
        insts.append(combine)
        labs.append(jnp.asarray(real_labels, jnp.int32))
    return jnp.concatenate(insts, axis=0), jnp.concatenate(labs, axis=0)


# ----------------------------------- main ----------------------------------- #
if __name__ == "__main__":
    B, num_spans, D, L, max_preds = 2, 16, 32, 8, 4
    key = jax.random.PRNGKey(0)
    k_param, k_span, k_lab = jax.random.split(key, 3)

    params = init_params(k_param, num_labels=L, feature_dim=D, fflayers=2)

    span_repr = jax.random.normal(k_span, (B, num_spans, D), jnp.float32)
    len_info = np.array([12, 16], np.int32)
    predicates = np.full((B, max_preds), -1, np.int32)
    predicates[0, :3] = [3, 7, 10]
    predicates[1, :2] = [1, 5]
    labels = np.full((B, max_preds, num_spans), -1, np.int32)
    lab_vals = np.asarray(jax.random.randint(k_lab, (B, max_preds, num_spans), 0, L))
    labels[0, :3, :12] = lab_vals[0, :3, :12]
    labels[1, :2, :16] = lab_vals[1, :2, :16]

    # f32 path (strict check against the pure-JAX reference)
    scores, real_labels = biaffine_forward(params, span_repr, predicates, labels, len_info)
    scores = jax.block_until_ready(scores)
    real_labels = jax.block_until_ready(real_labels)

    ref_scores, ref_labels = biaffine_reference(params, span_repr, predicates, labels, len_info)
    np.testing.assert_allclose(np.asarray(scores), np.asarray(ref_scores),
                               rtol=2e-2, atol=2e-2)
    assert np.array_equal(np.asarray(real_labels), np.asarray(ref_labels))
    assert scores.shape == (3 * 12 + 2 * 16, L)

    # bf16-input / f32-accumulate path (v6e / v7x MXU), loose smoke check
    scores_bf16, _ = biaffine_forward(params, span_repr, predicates, labels,
                                      len_info, compute_dtype=jnp.bfloat16)
    scores_bf16 = jax.block_until_ready(scores_bf16)
    np.testing.assert_allclose(np.asarray(scores_bf16, np.float32),
                               np.asarray(ref_scores), rtol=2e-1, atol=2e-1)

    print("KERNEL_OK")
</pallas_src>

<mosaic_0001>
module attributes {stable_mosaic.version = 11 : i64} {
  func.func @_biaffine_kernel(%arg0: i32, %arg1: i32, %arg2: memref<2x8xi32, #tpu.memory_space<smem>>, %arg3: memref<1x128x128xf32, #tpu.memory_space<vmem>>, %arg4: memref<128x128xf32, #tpu.memory_space<vmem>>, %arg5: memref<1x128xf32, #tpu.memory_space<vmem>>, %arg6: memref<128x128xf32, #tpu.memory_space<vmem>>, %arg7: memref<1x128xf32, #tpu.memory_space<vmem>>, %arg8: memref<1x128xf32, #tpu.memory_space<vmem>>, %arg9: memref<1x128xf32, #tpu.memory_space<vmem>>, %arg10: memref<1x1x128xf32, #tpu.memory_space<vmem>>, %arg11: memref<1x1x128xf32, #tpu.memory_space<vmem>>, %arg12: memref<1x128x128xf32, #tpu.memory_space<vmem>>, %arg13: memref<8xf32, #tpu.memory_space<smem>>, %arg14: memref<1x1x8x128xf32, #tpu.memory_space<vmem>>, %arg15: memref<8x128xf32, #tpu.memory_space<vmem>>, %arg16: memref<8x1xf32, #tpu.memory_space<vmem>>, %arg17: memref<1x128xf32, #tpu.memory_space<vmem>>) attributes {dimension_semantics = [#tpu.dimension_semantics<parallel>, #tpu.dimension_semantics<arbitrary>], iteration_bounds = array<i64: 2, 8>, scalar_prefetch = 1 : i64, scratch_operands = 3 : i64, tpu.core_type = #tpu.core_type<tc>, window_params = [{transform_indices = @transform_0, window_bounds = array<i64: 1, 128, 128>}, {pipeline_mode = #tpu.pipeline_mode<synchronous>, transform_indices = @transform_1, window_bounds = array<i64: 128, 128>}, {pipeline_mode = #tpu.pipeline_mode<synchronous>, transform_indices = @transform_2, window_bounds = array<i64: 1, 128>}, {pipeline_mode = #tpu.pipeline_mode<synchronous>, transform_indices = @transform_3, window_bounds = array<i64: 128, 128>}, {pipeline_mode = #tpu.pipeline_mode<synchronous>, transform_indices = @transform_4, window_bounds = array<i64: 1, 128>}, {pipeline_mode = #tpu.pipeline_mode<synchronous>, transform_indices = @transform_5, window_bounds = array<i64: 1, 128>}, {pipeline_mode = #tpu.pipeline_mode<synchronous>, transform_indices = @transform_6, window_bounds = array<i64: 1, 128>}, {transform_indices = @transform_7, window_bounds = array<i64: 1, 1, 128>}, {transform_indices = @transform_8, window_bounds = array<i64: 1, 1, 128>}, {transform_indices = @transform_9, window_bounds = array<i64: 1, 128, 128>}, {transform_indices = @transform_10, window_bounds = array<i64: 8>}, {transform_indices = @transform_11, window_bounds = array<i64: 1, 1, 8, 128>}]} {
    %c0 = arith.constant 0 : index
    %c0_0 = arith.constant 0 : index
    %c0_1 = arith.constant 0 : index
    %0 = vector.load %arg3[%c0, %c0_0, %c0_1] : memref<1x128x128xf32, #tpu.memory_space<vmem>>, vector<1x128x128xf32>
    %1 = vector.shape_cast %0 : vector<1x128x128xf32> to vector<128x128xf32>
    %c0_i32 = arith.constant 0 : i32
    %2 = arith.cmpi eq, %arg1, %c0_i32 : i32
    %3 = arith.extui %2 : i1 to i32
    %c0_i32_2 = arith.constant 0 : i32
    %4 = arith.cmpi ne, %3, %c0_i32_2 : i32
    scf.if %4 {
      %37 = tpu.iota {dimensions = array<i32: 1>} : vector<8x128xi32>
      %38 = tpu.iota {dimensions = array<i32: 0>} : vector<8x128xi32>
      %c0_i32_26 = arith.constant 0 : i32
      %39 = vector.broadcast %c0_i32_26 : i32 to vector<8x128xi32>
      %c0_i32_27 = arith.constant 0 : i32
      %40 = vector.broadcast %c0_i32_27 : i32 to vector<8x128xi32>
      %41 = arith.cmpi eq, %38, %40 : vector<8x128xi32>
      %42 = arith.index_cast %arg0 : i32 to index
      %c0_28 = arith.constant 0 : index
      %43 = memref.load %arg2[%42, %c0_28] : memref<2x8xi32, #tpu.memory_space<smem>>
      %44 = vector.broadcast %43 : i32 to vector<8x128xi32>
      %45 = arith.select %41, %44, %39 : vector<8x128xi1>, vector<8x128xi32>
      %c1_i32 = arith.constant 1 : i32
      %46 = vector.broadcast %c1_i32 : i32 to vector<8x128xi32>
      %47 = arith.cmpi eq, %38, %46 : vector<8x128xi32>
      %48 = arith.index_cast %arg0 : i32 to index
      %c1 = arith.constant 1 : index
      %49 = memref.load %arg2[%48, %c1] : memref<2x8xi32, #tpu.memory_space<smem>>
      %50 = vector.broadcast %49 : i32 to vector<8x128xi32>
      %51 = arith.select %47, %50, %45 : vector<8x128xi1>, vector<8x128xi32>
      %c2_i32 = arith.constant 2 : i32
      %52 = vector.broadcast %c2_i32 : i32 to vector<8x128xi32>
      %53 = arith.cmpi eq, %38, %52 : vector<8x128xi32>
      %54 = arith.index_cast %arg0 : i32 to index
      %c2 = arith.constant 2 : index
      %55 = memref.load %arg2[%54, %c2] : memref<2x8xi32, #tpu.memory_space<smem>>
      %56 = vector.broadcast %55 : i32 to vector<8x128xi32>
      %57 = arith.select %53, %56, %51 : vector<8x128xi1>, vector<8x128xi32>
      %c3_i32 = arith.constant 3 : i32
      %58 = vector.broadcast %c3_i32 : i32 to vector<8x128xi32>
      %59 = arith.cmpi eq, %38, %58 : vector<8x128xi32>
      %60 = arith.index_cast %arg0 : i32 to index
      %c3 = arith.constant 3 : index
      %61 = memref.load %arg2[%60, %c3] : memref<2x8xi32, #tpu.memory_space<smem>>
      %62 = vector.broadcast %61 : i32 to vector<8x128xi32>
      %63 = arith.select %59, %62, %57 : vector<8x128xi1>, vector<8x128xi32>
      %c4_i32 = arith.constant 4 : i32
      %64 = vector.broadcast %c4_i32 : i32 to vector<8x128xi32>
      %65 = arith.cmpi eq, %38, %64 : vector<8x128xi32>
      %66 = arith.index_cast %arg0 : i32 to index
      %c4 = arith.constant 4 : index
      %67 = memref.load %arg2[%66, %c4] : memref<2x8xi32, #tpu.memory_space<smem>>
      %68 = vector.broadcast %67 : i32 to vector<8x128xi32>
      %69 = arith.select %65, %68, %63 : vector<8x128xi1>, vector<8x128xi32>
      %c5_i32 = arith.constant 5 : i32
      %70 = vector.broadcast %c5_i32 : i32 to vector<8x128xi32>
      %71 = arith.cmpi eq, %38, %70 : vector<8x128xi32>
      %72 = arith.index_cast %arg0 : i32 to index
      %c5 = arith.constant 5 : index
      %73 = memref.load %arg2[%72, %c5] : memref<2x8xi32, #tpu.memory_space<smem>>
      %74 = vector.broadcast %73 : i32 to vector<8x128xi32>
      %75 = arith.select %71, %74, %69 : vector<8x128xi1>, vector<8x128xi32>
      %c6_i32 = arith.constant 6 : i32
      %76 = vector.broadcast %c6_i32 : i32 to vector<8x128xi32>
      %77 = arith.cmpi eq, %38, %76 : vector<8x128xi32>
      %78 = arith.index_cast %arg0 : i32 to index
      %c6 = arith.constant 6 : index
      %79 = memref.load %arg2[%78, %c6] : memref<2x8xi32, #tpu.memory_space<smem>>
      %80 = vector.broadcast %79 : i32 to vector<8x128xi32>
      %81 = arith.select %77, %80, %75 : vector<8x128xi1>, vector<8x128xi32>
      %c7_i32_29 = arith.constant 7 : i32
      %82 = vector.broadcast %c7_i32_29 : i32 to vector<8x128xi32>
      %83 = arith.cmpi eq, %38, %82 : vector<8x128xi32>
      %84 = arith.index_cast %arg0 : i32 to index
      %c7 = arith.constant 7 : index
      %85 = memref.load %arg2[%84, %c7] : memref<2x8xi32, #tpu.memory_space<smem>>
      %86 = vector.broadcast %85 : i32 to vector<8x128xi32>
      %87 = arith.select %83, %86, %81 : vector<8x128xi1>, vector<8x128xi32>
      %88 = arith.cmpi eq, %37, %87 : vector<8x128xi32>
      %89 = arith.extui %88 : vector<8x128xi1> to vector<8x128xi32>
      %90 = arith.sitofp %89 : vector<8x128xi32> to vector<8x128xf32>
      %cst_30 = arith.constant dense<0.000000e+00> : vector<8x128xf32>
      %91 = tpu.matmul %90, %1, %cst_30 {dimension_numbers = #tpu.dot_dimension_numbers<[1], [0], [0], [1], [0, 0, 1, 1], [], []>} : vector<8x128xf32>, vector<128x128xf32>, vector<8x128xf32> -> vector<8x128xf32>
      %c0_31 = arith.constant 0 : index
      %c0_32 = arith.constant 0 : index
      %92 = vector.load %arg15[%c0_31, %c0_32] : memref<8x128xf32, #tpu.memory_space<vmem>>, vector<8x128xf32>
      tpu.vector_store %arg15[%c0_31, %c0_32], %91 {strides = array<i32>} : memref<8x128xf32, #tpu.memory_space<vmem>>, vector<8x128xf32>,
      %c0_33 = arith.constant 0 : index
      %c0_34 = arith.constant 0 : index
      %93 = vector.load %arg4[%c0_33, %c0_34] : memref<128x128xf32, #tpu.memory_space<vmem>>, vector<128x128xf32>
      %cst_35 = arith.constant dense<0.000000e+00> : vector<8x128xf32>
      %94 = tpu.matmul %91, %93, %cst_35 {dimension_numbers = #tpu.dot_dimension_numbers<[1], [0], [0], [1], [0, 0, 1, 1], [], []>} : vector<8x128xf32>, vector<128x128xf32>, vector<8x128xf32> -> vector<8x128xf32>
      %c0_36 = arith.constant 0 : index
      %c0_37 = arith.constant 0 : index
      %95 = vector.load %arg5[%c0_36, %c0_37] : memref<1x128xf32, #tpu.memory_space<vmem>>, vector<1x128xf32>
      %96 = vector.broadcast %95 : vector<1x128xf32> to vector<8x128xf32>
      %97 = arith.addf %94, %96 : vector<8x128xf32>
      %cst_38 = arith.constant 0.000000e+00 : f32
      %98 = vector.broadcast %cst_38 : f32 to vector<8x128xf32>
      %99 = arith.maximumf %97, %98 : vector<8x128xf32>
      %c0_39 = arith.constant 0 : index
      %c0_40 = arith.constant 0 : index
      %100 = vector.load %arg8[%c0_39, %c0_40] : memref<1x128xf32, #tpu.memory_space<vmem>>, vector<1x128xf32>
      %101 = vector.broadcast %100 : vector<1x128xf32> to vector<8x128xf32>
      %102 = arith.mulf %99, %101 : vector<8x128xf32>
      %cst_41 = arith.constant dense<0.000000e+00> : vector<8xf32>
      %103 = vector.multi_reduction <add>, %102, %cst_41 [1] : vector<8x128xf32> to vector<8xf32>
      %104 = vector.shape_cast %103 : vector<8xf32> to vector<8x1xf32>
      %c0_42 = arith.constant 0 : index
      %c0_43 = arith.constant 0 : index
      %105 = vector.load %arg16[%c0_42, %c0_43] : memref<8x1xf32, #tpu.memory_space<vmem>>, vector<8x1xf32>
      tpu.vector_store %arg16[%c0_42, %c0_43], %104 {strides = array<i32>} : memref<8x1xf32, #tpu.memory_space<vmem>>, vector<8x1xf32>,
      %c0_44 = arith.constant 0 : index
      %c0_45 = arith.constant 0 : index
      %106 = vector.load %arg6[%c0_44, %c0_45] : memref<128x128xf32, #tpu.memory_space<vmem>>, vector<128x128xf32>
      %cst_46 = arith.constant dense<0.000000e+00> : vector<128x128xf32>
      %107 = tpu.matmul %1, %106, %cst_46 {dimension_numbers = #tpu.dot_dimension_numbers<[1], [0], [0], [1], [0, 0, 1, 1], [], []>} : vector<128x128xf32>, vector<128x128xf32>, vector<128x128xf32> -> vector<128x128xf32>
      %c0_47 = arith.constant 0 : index
      %c0_48 = arith.constant 0 : index
      %108 = vector.load %arg7[%c0_47, %c0_48] : memref<1x128xf32, #tpu.memory_space<vmem>>, vector<1x128xf32>
      %109 = vector.broadcast %108 : vector<1x128xf32> to vector<128x128xf32>
      %110 = arith.addf %107, %109 : vector<128x128xf32>
      %cst_49 = arith.constant 0.000000e+00 : f32
      %111 = vector.broadcast %cst_49 : f32 to vector<128x128xf32>
      %112 = arith.maximumf %110, %111 : vector<128x128xf32>
      %c0_50 = arith.constant 0 : index
      %c0_51 = arith.constant 0 : index
      %113 = vector.load %arg9[%c0_50, %c0_51] : memref<1x128xf32, #tpu.memory_space<vmem>>, vector<1x128xf32>
      %cst_52 = arith.constant dense<0.000000e+00> : vector<1x128xf32>
      %114 = tpu.matmul %113, %112, %cst_52 {dimension_numbers = #tpu.dot_dimension_numbers<[1], [1], [0], [0], [0, 0, 1, 0], [], []>} : vector<1x128xf32>, vector<128x128xf32>, vector<1x128xf32> -> vector<1x128xf32>
      %c0_53 = arith.constant 0 : index
      %c0_54 = arith.constant 0 : index
      %115 = vector.load %arg17[%c0_53, %c0_54] : memref<1x128xf32, #tpu.memory_space<vmem>>, vector<1x128xf32>
      tpu.vector_store %arg17[%c0_53, %c0_54], %114 {strides = array<i32>} : memref<1x128xf32, #tpu.memory_space<vmem>>, vector<1x128xf32>,
    } else {
    }
    %c0_3 = arith.constant 0 : index
    %c0_4 = arith.constant 0 : index
    %5 = vector.load %arg15[%c0_3, %c0_4] : memref<8x128xf32, #tpu.memory_space<vmem>>, vector<8x128xf32>
    %c0_5 = arith.constant 0 : index
    %c0_6 = arith.constant 0 : index
    %c0_7 = arith.constant 0 : index
    %6 = vector.load %arg12[%c0_5, %c0_6, %c0_7] : memref<1x128x128xf32, #tpu.memory_space<vmem>>, vector<1x128x128xf32>
    %7 = vector.shape_cast %6 : vector<1x128x128xf32> to vector<128x128xf32>
    %cst = arith.constant dense<0.000000e+00> : vector<8x128xf32>
    %8 = tpu.matmul %5, %7, %cst {dimension_numbers = #tpu.dot_dimension_numbers<[1], [0], [0], [1], [0, 0, 1, 1], [], []>} : vector<8x128xf32>, vector<128x128xf32>, vector<8x128xf32> -> vector<8x128xf32>
    %cst_8 = arith.constant dense<0.000000e+00> : vector<8x128xf32>
    %9 = tpu.matmul %8, %1, %cst_8 {dimension_numbers = #tpu.dot_dimension_numbers<[1], [1], [0], [0], [0, 0, 1, 0], [], []>} : vector<8x128xf32>, vector<128x128xf32>, vector<8x128xf32> -> vector<8x128xf32>
    %c0_9 = arith.constant 0 : index
    %c0_10 = arith.constant 0 : index
    %c0_11 = arith.constant 0 : index
    %10 = vector.load %arg10[%c0_9, %c0_10, %c0_11] : memref<1x1x128xf32, #tpu.memory_space<vmem>>, vector<1x1x128xf32>
    %11 = vector.shape_cast %10 : vector<1x1x128xf32> to vector<1x128xf32>
    %12 = vector.broadcast %11 : vector<1x128xf32> to vector<8x128xf32>
    %13 = arith.mulf %5, %12 : vector<8x128xf32>
    %cst_12 = arith.constant dense<0.000000e+00> : vector<8xf32>
    %14 = vector.multi_reduction <add>, %13, %cst_12 [1] : vector<8x128xf32> to vector<8xf32>
    %15 = vector.shape_cast %14 : vector<8xf32> to vector<8x1xf32>
    %c0_13 = arith.constant 0 : index
    %c0_14 = arith.constant 0 : index
    %16 = vector.load %arg16[%c0_13, %c0_14] : memref<8x1xf32, #tpu.memory_space<vmem>>, vector<8x1xf32>
    %17 = arith.addf %15, %16 : vector<8x1xf32>
    %18 = arith.index_cast %arg1 : i32 to index
    %19 = memref.load %arg13[%18] : memref<8xf32, #tpu.memory_space<smem>>
    %20 = vector.broadcast %19 : f32 to vector<8x1xf32>
    %21 = arith.addf %17, %20 : vector<8x1xf32>
    %c0_15 = arith.constant 0 : index
    %c0_16 = arith.constant 0 : index
    %c0_17 = arith.constant 0 : index
    %22 = vector.load %arg11[%c0_15, %c0_16, %c0_17] : memref<1x1x128xf32, #tpu.memory_space<vmem>>, vector<1x1x128xf32>
    %23 = vector.shape_cast %22 : vector<1x1x128xf32> to vector<1x128xf32>
    %cst_18 = arith.constant dense<0.000000e+00> : vector<1x128xf32>
    %24 = tpu.matmul %23, %1, %cst_18 {dimension_numbers = #tpu.dot_dimension_numbers<[1], [1], [0], [0], [0, 0, 1, 0], [], []>} : vector<1x128xf32>, vector<128x128xf32>, vector<1x128xf32> -> vector<1x128xf32>
    %c0_19 = arith.constant 0 : index
    %c0_20 = arith.constant 0 : index
    %25 = vector.load %arg17[%c0_19, %c0_20] : memref<1x128xf32, #tpu.memory_space<vmem>>, vector<1x128xf32>
    %26 = arith.addf %24, %25 : vector<1x128xf32>
    %27 = vector.broadcast %21 : vector<8x1xf32> to vector<8x128xf32>
    %28 = arith.addf %9, %27 : vector<8x128xf32>
    %29 = vector.broadcast %26 : vector<1x128xf32> to vector<8x128xf32>
    %30 = arith.addf %28, %29 : vector<8x128xf32>
    %c7_i32 = arith.constant 7 : i32
    %31 = arith.cmpi eq, %arg1, %c7_i32 : i32
    %cst_21 = arith.constant 0.000000e+00 : f32
    %32 = vector.broadcast %cst_21 : f32 to vector<8x128xf32>
    %33 = arith.select %31, %32, %30 : vector<8x128xf32>
    %c0_22 = arith.constant 0 : index
    %c0_23 = arith.constant 0 : index
    %c0_24 = arith.constant 0 : index
    %c0_25 = arith.constant 0 : index
    %34 = vector.load %arg14[%c0_22, %c0_23, %c0_24, %c0_25] : memref<1x1x8x128xf32, #tpu.memory_space<vmem>>, vector<1x1x8x128xf32>
    %35 = vector.shape_cast %34 : vector<1x1x8x128xf32> to vector<8x128xf32>
    %36 = vector.shape_cast %33 : vector<8x128xf32> to vector<1x1x8x128xf32>
    tpu.vector_store %arg14[%c0_22, %c0_23, %c0_24, %c0_25], %36 {strides = array<i32>} : memref<1x1x8x128xf32, #tpu.memory_space<vmem>>, vector<1x1x8x128xf32>,
    return
  }
  func.func @transform_0(%arg0: i32, %arg1: i32, %arg2: memref<2x8xi32, #tpu.memory_space<smem>>) -> (i32, i32, i32) {
    %c0_i32 = arith.constant 0 : i32
    %c0_i32_0 = arith.constant 0 : i32
    %c0_i32_1 = arith.constant 0 : i32
    return %arg0, %c0_i32, %c0_i32_0 : i32, i32, i32
  }
  func.func @transform_1(%arg0: i32, %arg1: i32, %arg2: memref<2x8xi32, #tpu.memory_space<smem>>) -> (i32, i32) {
    %c0_i32 = arith.constant 0 : i32
    %c0_i32_0 = arith.constant 0 : i32
    %c0_i32_1 = arith.constant 0 : i32
    return %c0_i32, %c0_i32_0 : i32, i32
  }
  func.func @transform_2(%arg0: i32, %arg1: i32, %arg2: memref<2x8xi32, #tpu.memory_space<smem>>) -> (i32, i32) {
    %c0_i32 = arith.constant 0 : i32
    %c0_i32_0 = arith.constant 0 : i32
    %c0_i32_1 = arith.constant 0 : i32
    return %c0_i32, %c0_i32_0 : i32, i32
  }
  func.func @transform_3(%arg0: i32, %arg1: i32, %arg2: memref<2x8xi32, #tpu.memory_space<smem>>) -> (i32, i32) {
    %c0_i32 = arith.constant 0 : i32
    %c0_i32_0 = arith.constant 0 : i32
    %c0_i32_1 = arith.constant 0 : i32
    return %c0_i32, %c0_i32_0 : i32, i32
  }
  func.func @transform_4(%arg0: i32, %arg1: i32, %arg2: memref<2x8xi32, #tpu.memory_space<smem>>) -> (i32, i32) {
    %c0_i32 = arith.constant 0 : i32
    %c0_i32_0 = arith.constant 0 : i32
    %c0_i32_1 = arith.constant 0 : i32
    return %c0_i32, %c0_i32_0 : i32, i32
  }
  func.func @transform_5(%arg0: i32, %arg1: i32, %arg2: memref<2x8xi32, #tpu.memory_space<smem>>) -> (i32, i32) {
    %c0_i32 = arith.constant 0 : i32
    %c0_i32_0 = arith.constant 0 : i32
    %c0_i32_1 = arith.constant 0 : i32
    return %c0_i32, %c0_i32_0 : i32, i32
  }
  func.func @transform_6(%arg0: i32, %arg1: i32, %arg2: memref<2x8xi32, #tpu.memory_space<smem>>) -> (i32, i32) {
    %c0_i32 = arith.constant 0 : i32
    %c0_i32_0 = arith.constant 0 : i32
    %c0_i32_1 = arith.constant 0 : i32
    return %c0_i32, %c0_i32_0 : i32, i32
  }
  func.func @transform_7(%arg0: i32, %arg1: i32, %arg2: memref<2x8xi32, #tpu.memory_space<smem>>) -> (i32, i32, i32) {
    %c0_i32 = arith.constant 0 : i32
    %c0_i32_0 = arith.constant 0 : i32
    %c0_i32_1 = arith.constant 0 : i32
    return %arg1, %c0_i32, %c0_i32_0 : i32, i32, i32
  }
  func.func @transform_8(%arg0: i32, %arg1: i32, %arg2: memref<2x8xi32, #tpu.memory_space<smem>>) -> (i32, i32, i32) {
    %c0_i32 = arith.constant 0 : i32
    %c0_i32_0 = arith.constant 0 : i32
    %c0_i32_1 = arith.constant 0 : i32
    return %arg1, %c0_i32, %c0_i32_0 : i32, i32, i32
  }
  func.func @transform_9(%arg0: i32, %arg1: i32, %arg2: memref<2x8xi32, #tpu.memory_space<smem>>) -> (i32, i32, i32) {
    %c0_i32 = arith.constant 0 : i32
    %c0_i32_0 = arith.constant 0 : i32
    %c0_i32_1 = arith.constant 0 : i32
    return %arg1, %c0_i32, %c0_i32_0 : i32, i32, i32
  }
  func.func @transform_10(%arg0: i32, %arg1: i32, %arg2: memref<2x8xi32, #tpu.memory_space<smem>>) -> i32 {
    %c0_i32 = arith.constant 0 : i32
    %c0_i32_0 = arith.constant 0 : i32
    return %c0_i32 : i32
  }
  func.func @transform_11(%arg0: i32, %arg1: i32, %arg2: memref<2x8xi32, #tpu.memory_space<smem>>) -> (i32, i32, i32, i32) {
    %c0_i32 = arith.constant 0 : i32
    %c0_i32_0 = arith.constant 0 : i32
    %c0_i32_1 = arith.constant 0 : i32
    return %arg0, %arg1, %c0_i32, %c0_i32_0 : i32, i32, i32, i32
  }
}

</mosaic_0001>

<llo_original>
// kernel: tpu_custom_call.1
$region0: #{tpu_custom_call.1}
  #allocation0 [shape = 'u32[]', space=smem, size = 0x4, offset = 0x4, fixed_abs, tag = 'smem constant byte address 0x4 - core index']
  #allocation1 [shape = 'u32[144,128]{1,0:T(1,128)}', space=vmem, size = 0x12000, scoped, tag = 'internal scratch']
  #allocation2 [shape = 'f32[8,128]{1,0:T(8,128)}', space=vmem, size = 0x1000, scoped, tag = 'scratch operand']
  #allocation3 [shape = 'f32[8,1]{1,0:T(8,128)}', space=vmem, size = 0x1000, scoped, tag = 'scratch operand']
  #allocation4 [shape = 'f32[1,128]{1,0:T(1,128)}', space=vmem, size = 0x200, scoped, tag = 'scratch operand']
  #allocation5 [shape = 's32[1]{0}', space=sflag, size = 0x4, scoped, tag = 'scoped memory for tpu_custom_call.1']
  #allocation6 [shape = 'u8[1024]{0}', space=smem, size = 0x400, scoped, tag = 'prefetched SMEM operand 0']
  %s0 = inlined_call_operand.hbm [shape: s32[2,8], index: 0, kind: input, shape index: {}]
  %s1 = inlined_call_operand.hbm [shape: f32[2,128,128], index: 1, kind: input, shape index: {}]
  %s2 = inlined_call_operand.hbm [shape: f32[128,128], index: 2, kind: input, shape index: {}]
  %s3 = inlined_call_operand.hbm [shape: f32[1,128], index: 3, kind: input, shape index: {}]
  %s4 = inlined_call_operand.hbm [shape: f32[128,128], index: 4, kind: input, shape index: {}]
  %s5 = inlined_call_operand.hbm [shape: f32[1,128], index: 5, kind: input, shape index: {}]
  %s6 = inlined_call_operand.hbm [shape: f32[1,128], index: 6, kind: input, shape index: {}]
  %s7 = inlined_call_operand.hbm [shape: f32[1,128], index: 7, kind: input, shape index: {}]
  %s8 = inlined_call_operand.vmem [shape: f32[8,1,128], index: 8, kind: input, shape index: {}]
  %s9 = inlined_call_operand.vmem [shape: f32[8,1,128], index: 9, kind: input, shape index: {}]
  %s10 = inlined_call_operand.hbm [shape: f32[8,128,128], index: 10, kind: input, shape index: {}]
  %s11 = inlined_call_operand.vmem [shape: f32[8], index: 11, kind: input, shape index: {}]
  %s12 = inlined_call_operand.hbm [shape: f32[2,8,8,128], index: 12, kind: output, shape index: {}]
  %s13 = sld [smem:[#allocation0]]
  $region117: #{tpu_custom_call.1} parent=0
    _
  %s15 = ssub.s32 1, %s13
  %s16 = scalar_select 0, %s15, %s13
  %18 = dma.hbm_to_smem %s0, 32, [#allocation6], [#allocation5]
  %19 = dma.done [#allocation5], 32
  %20 = sfence
  $region1: #{tpu_custom_call.1} parent=0
    #allocation7 [shape = 'u8[131072]{0}', space=vmem, size = 0x20000, scoped, tag = 'input window, operand 1']
    #allocation8 [shape = 's32[2]{0}', space=sflag, size = 0x8, scoped, tag = 'scoped memory for tpu_custom_call.1']
    #allocation9 [shape = 's32[2]{0}', space=sflag, size = 0x8, scoped, tag = 'scoped memory for tpu_custom_call.1']
    #allocation10 [shape = 's32[2]{0}', space=sflag, size = 0x8, scoped, tag = 'scoped memory for tpu_custom_call.1']
    #allocation11 [shape = 'u8[65536]{0}', space=vmem, size = 0x10000, scoped, tag = 'input window, operand 2, single buffered']
    #allocation12 [shape = 's32[1]{0}', space=sflag, size = 0x4, scoped, tag = 'scoped memory for tpu_custom_call.1']
    #allocation13 [shape = 'u8[512]{0}', space=vmem, size = 0x400, scoped, tag = 'input window, operand 3, single buffered']
    #allocation14 [shape = 'u8[65536]{0}', space=vmem, size = 0x10000, scoped, tag = 'input window, operand 4, single buffered']
    #allocation15 [shape = 's32[1]{0}', space=sflag, size = 0x4, scoped, tag = 'scoped memory for tpu_custom_call.1']
    #allocation16 [shape = 'u8[512]{0}', space=vmem, size = 0x400, scoped, tag = 'input window, operand 5, single buffered']
    #allocation17 [shape = 'u8[512]{0}', space=vmem, size = 0x400, scoped, tag = 'input window, operand 6, single buffered']
    #allocation18 [shape = 's32[1]{0}', space=sflag, size = 0x4, scoped, tag = 'scoped memory for tpu_custom_call.1']
    #allocation19 [shape = 'u8[512]{0}', space=vmem, size = 0x400, scoped, tag = 'input window, operand 7, single buffered']
    #allocation20 [shape = 'u8[131072]{0}', space=vmem, size = 0x20000, scoped, tag = 'input window, operand 10']
    #allocation21 [shape = 's32[2]{0}', space=sflag, size = 0x8, scoped, tag = 'scoped memory for tpu_custom_call.1']
    #allocation22 [shape = 'u8[512]{0}', space=smem, size = 0x200, scoped, tag = 'input window, operand 11, single buffered']
    #allocation23 [shape = 'u8[8192]{0}', space=vmem, size = 0x2000, scoped, tag = 'output window, operand 0']
    %21 = vsyncpa [#allocation8], 0
    %s22 = scalar_lea.sflag [#allocation8], 1
    %23 = vsyncpa %s22, 0
    %24 = vsyncpa [#allocation12], 0
    %25 = vsyncpa [#allocation15], 0
    %26 = vsyncpa [#allocation18], 0
    %27 = vsyncpa [#allocation21], 0
    %s28 = scalar_lea.sflag [#allocation21], 1
    %29 = vsyncpa %s28, 0
    %30 = vsyncpa [#allocation10], 0
    %31 = vsyncpa [#allocation9], 0
    %s32 = scalar_lea.sflag [#allocation9], 1
    %33 = vsyncpa %s32, 0
    loop: start=0, step=1, limit=18
    $region2: #{tpu_custom_call.1} parent=1 // loop_pre_header
      _
    $region3: #{tpu_custom_call.1} parent=1 // loop_header
      %s35 = sphi 0, %s39
      %p36 = scmp.ge.s32.totalorder %s35, 18
      %s42 = sphi 0, %s54
      %s43 = sphi 0, %s50
      %s44 = sphi 0, %s42
      %s45 = sphi 0, %s43
      %s46 = sphi 0, %s44
      %s47 = sphi 0, %s45
      %s57 = sphi 0, %s59
      %s60 = sphi 0, %s57
      %s61 = sphi 0, %s60
      %s77 = sphi 0, %s61
      %s81 = sphi 0, %s81
      %s83 = sphi 0, %s81
      %s84 = sphi 0, %s83
      %s98 = sphi 0, %s84
      %s102 = sphi 0, %s102
      %s104 = sphi 0, %s102
      %s105 = sphi 0, %s104
      %s119 = sphi 0, %s105
      %s123 = sphi 0, %s123
      %s125 = sphi 0, %s123
      %s126 = sphi 0, %s125
      %s140 = sphi 0, %s126
      %s144 = sphi 0, %s144
      %s146 = sphi 0, %s144
      %s147 = sphi 0, %s146
      %s161 = sphi 0, %s147
      %s165 = sphi 0, %s165
      %s167 = sphi 0, %s165
      %s168 = sphi 0, %s167
      %s182 = sphi 0, %s168
      %s186 = sphi 0, %s186
      %s188 = sphi 0, %s186
      %s189 = sphi 0, %s188
      %s203 = sphi 0, %s189
      %s209 = sphi 0, %s211
      %s212 = sphi 0, %s209
      %s213 = sphi 0, %s212
      %s229 = sphi 0, %s213
      %s235 = sphi 0, %s237
      %s238 = sphi 0, %s235
      %s239 = sphi 0, %s238
      %s255 = sphi 0, %s239
      %s261 = sphi 0, %s263
      %s264 = sphi 0, %s261
      %s265 = sphi 0, %s264
      %s281 = sphi 0, %s265
      %s285 = sphi 0, %s285
      %s287 = sphi 0, %s285
      %s288 = sphi 0, %s287
      %s302 = sphi 0, %s288
      %s310 = sphi 0, %s312
      %s313 = sphi 0, %s310
      %s314 = sphi 0, %s313
      %s330 = sphi 0, %s314
    $region4: #{tpu_custom_call.1} parent=1 // loop_header_branch
      %38 = sbr.rel (%p36) target = $region8
    $region5: #{tpu_custom_call.1} parent=1 // loop_body
      %s40 = ssub.s32 %s35, 1
      %s41 = ssub.s32 %s35, 2
      %s48 = sadd.s32 1, %s43
      %p49 = scmp.ge.s32.totalorder %s48, 8
      %s50 = scalar_select %p49, 0, %s48
      %s51 = sadd.s32 1, %s42
      %s52 = scalar_select %p49, %s51, %s42
      %p53 = scmp.ge.s32.totalorder %s52, 2
      %s54 = scalar_select %p53, 0, %s52
      %s55 = ssub.s32 %s42, %s54
      %p56 = scmp.eq.s32.totalorder %s55, 0
      %s58 = sadd.s32 %s57, 1
      %s59 = scalar_select %p56, %s57, %s58
      %p62 = pneg %p56
      %p63 = scmp.eq.s32.totalorder %s35, 15
      %p64 = por %p62, %p63
      %p65 = scmp.ne.s32.totalorder %s57, %s60
      %p66 = scmp.eq.s32.totalorder %s35, 0
      %p67 = por %p65, %p66
      %p68 = scmp.ne.s32.totalorder %s57, %s60
      %p69 = scmp.eq.s32.totalorder %s40, 15
      %p70 = por %p68, %p69
      %p71 = scmp.ne.s32.totalorder %s60, %s61
      %p72 = scmp.eq.s32.totalorder %s40, 0
      %p73 = por %p71, %p72
      %p74 = scmp.ne.s32.totalorder %s60, %s61
      %p75 = scmp.eq.s32.totalorder %s41, 15
      %p76 = por %p74, %p75
      %p78 = scmp.ne.s32.totalorder %s61, %s77
      %p79 = scmp.eq.s32.totalorder %s41, 0
      %p80 = por %p78, %p79
      %s82 = sadd.s32 %s81, 1
      %p85 = scmp.eq.s32.totalorder %s35, 15
      %p86 = scmp.ne.s32.totalorder %s81, %s83
      %p87 = scmp.eq.s32.totalorder %s35, 0
      %p88 = por %p86, %p87
      %p89 = scmp.ne.s32.totalorder %s81, %s83
      %p90 = scmp.eq.s32.totalorder %s40, 15
      %p91 = por %p89, %p90
      %p92 = scmp.ne.s32.totalorder %s83, %s84
      %p93 = scmp.eq.s32.totalorder %s40, 0
      %p94 = por %p92, %p93
      %p95 = scmp.ne.s32.totalorder %s83, %s84
      %p96 = scmp.eq.s32.totalorder %s41, 15
      %p97 = por %p95, %p96
      %p99 = scmp.ne.s32.totalorder %s84, %s98
      %p100 = scmp.eq.s32.totalorder %s41, 0
      %p101 = por %p99, %p100
      %s103 = sadd.s32 %s102, 1
      %p106 = scmp.eq.s32.totalorder %s35, 15
      %p107 = scmp.ne.s32.totalorder %s102, %s104
      %p108 = scmp.eq.s32.totalorder %s35, 0
      %p109 = por %p107, %p108
      %p110 = scmp.ne.s32.totalorder %s102, %s104
      %p111 = scmp.eq.s32.totalorder %s40, 15
      %p112 = por %p110, %p111
      %p113 = scmp.ne.s32.totalorder %s104, %s105
      %p114 = scmp.eq.s32.totalorder %s40, 0
      %p115 = por %p113, %p114
      %p116 = scmp.ne.s32.totalorder %s104, %s105
      %p117 = scmp.eq.s32.totalorder %s41, 15
      %p118 = por %p116, %p117
      %p120 = scmp.ne.s32.totalorder %s105, %s119
      %p121 = scmp.eq.s32.totalorder %s41, 0
      %p122 = por %p120, %p121
      %s124 = sadd.s32 %s123, 1
      %p127 = scmp.eq.s32.totalorder %s35, 15
      %p128 = scmp.ne.s32.totalorder %s123, %s125
      %p129 = scmp.eq.s32.totalorder %s35, 0
      %p130 = por %p128, %p129
      %p131 = scmp.ne.s32.totalorder %s123, %s125
      %p132 = scmp.eq.s32.totalorder %s40, 15
      %p133 = por %p131, %p132
      %p134 = scmp.ne.s32.totalorder %s125, %s126
      %p135 = scmp.eq.s32.totalorder %s40, 0
      %p136 = por %p134, %p135
      %p137 = scmp.ne.s32.totalorder %s125, %s126
      %p138 = scmp.eq.s32.totalorder %s41, 15
      %p139 = por %p137, %p138
      %p141 = scmp.ne.s32.totalorder %s126, %s140
      %p142 = scmp.eq.s32.totalorder %s41, 0
      %p143 = por %p141, %p142
      %s145 = sadd.s32 %s144, 1
      %p148 = scmp.eq.s32.totalorder %s35, 15
      %p149 = scmp.ne.s32.totalorder %s144, %s146
      %p150 = scmp.eq.s32.totalorder %s35, 0
      %p151 = por %p149, %p150
      %p152 = scmp.ne.s32.totalorder %s144, %s146
      %p153 = scmp.eq.s32.totalorder %s40, 15
      %p154 = por %p152, %p153
      %p155 = scmp.ne.s32.totalorder %s146, %s147
      %p156 = scmp.eq.s32.totalorder %s40, 0
      %p157 = por %p155, %p156
      %p158 = scmp.ne.s32.totalorder %s146, %s147
      %p159 = scmp.eq.s32.totalorder %s41, 15
      %p160 = por %p158, %p159
      %p162 = scmp.ne.s32.totalorder %s147, %s161
      %p163 = scmp.eq.s32.totalorder %s41, 0
      %p164 = por %p162, %p163
      %s166 = sadd.s32 %s165, 1
      %p169 = scmp.eq.s32.totalorder %s35, 15
      %p170 = scmp.ne.s32.totalorder %s165, %s167
      %p171 = scmp.eq.s32.totalorder %s35, 0
      %p172 = por %p170, %p171
      %p173 = scmp.ne.s32.totalorder %s165, %s167
      %p174 = scmp.eq.s32.totalorder %s40, 15
      %p175 = por %p173, %p174
      %p176 = scmp.ne.s32.totalorder %s167, %s168
      %p177 = scmp.eq.s32.totalorder %s40, 0
      %p178 = por %p176, %p177
      %p179 = scmp.ne.s32.totalorder %s167, %s168
      %p180 = scmp.eq.s32.totalorder %s41, 15
      %p181 = por %p179, %p180
      %p183 = scmp.ne.s32.totalorder %s168, %s182
      %p184 = scmp.eq.s32.totalorder %s41, 0
      %p185 = por %p183, %p184
      %s187 = sadd.s32 %s186, 1
      %p190 = scmp.eq.s32.totalorder %s35, 15
      %p191 = scmp.ne.s32.totalorder %s186, %s188
      %p192 = scmp.eq.s32.totalorder %s35, 0
      %p193 = por %p191, %p192
      %p194 = scmp.ne.s32.totalorder %s186, %s188
      %p195 = scmp.eq.s32.totalorder %s40, 15
      %p196 = por %p194, %p195
      %p197 = scmp.ne.s32.totalorder %s188, %s189
      %p198 = scmp.eq.s32.totalorder %s40, 0
      %p199 = por %p197, %p198
      %p200 = scmp.ne.s32.totalorder %s188, %s189
      %p201 = scmp.eq.s32.totalorder %s41, 15
      %p202 = por %p200, %p201
      %p204 = scmp.ne.s32.totalorder %s189, %s203
      %p205 = scmp.eq.s32.totalorder %s41, 0
      %p206 = por %p204, %p205
      %s207 = ssub.s32 %s43, %s50
      %p208 = scmp.eq.s32.totalorder %s207, 0
      %s210 = sadd.s32 %s209, 1
      %s211 = scalar_select %p208, %s209, %s210
      %p214 = pneg %p208
      %p215 = scmp.eq.s32.totalorder %s35, 15
      %p216 = por %p214, %p215
      %p217 = scmp.ne.s32.totalorder %s209, %s212
      %p218 = scmp.eq.s32.totalorder %s35, 0
      %p219 = por %p217, %p218
      %p220 = scmp.ne.s32.totalorder %s209, %s212
      %p221 = scmp.eq.s32.totalorder %s40, 15
      %p222 = por %p220, %p221
      %p223 = scmp.ne.s32.totalorder %s212, %s213
      %p224 = scmp.eq.s32.totalorder %s40, 0
      %p225 = por %p223, %p224
      %p226 = scmp.ne.s32.totalorder %s212, %s213
      %p227 = scmp.eq.s32.totalorder %s41, 15
      %p228 = por %p226, %p227
      %p230 = scmp.ne.s32.totalorder %s213, %s229
      %p231 = scmp.eq.s32.totalorder %s41, 0
      %p232 = por %p230, %p231
      %s233 = ssub.s32 %s43, %s50
      %p234 = scmp.eq.s32.totalorder %s233, 0
      %s236 = sadd.s32 %s235, 1
      %s237 = scalar_select %p234, %s235, %s236
      %p240 = pneg %p234
      %p241 = scmp.eq.s32.totalorder %s35, 15
      %p242 = por %p240, %p241
      %p243 = scmp.ne.s32.totalorder %s235, %s238
      %p244 = scmp.eq.s32.totalorder %s35, 0
      %p245 = por %p243, %p244
      %p246 = scmp.ne.s32.totalorder %s235, %s238
      %p247 = scmp.eq.s32.totalorder %s40, 15
      %p248 = por %p246, %p247
      %p249 = scmp.ne.s32.totalorder %s238, %s239
      %p250 = scmp.eq.s32.totalorder %s40, 0
      %p251 = por %p249, %p250
      %p252 = scmp.ne.s32.totalorder %s238, %s239
      %p253 = scmp.eq.s32.totalorder %s41, 15
      %p254 = por %p252, %p253
      %p256 = scmp.ne.s32.totalorder %s239, %s255
      %p257 = scmp.eq.s32.totalorder %s41, 0
      %p258 = por %p256, %p257
      %s259 = ssub.s32 %s43, %s50
      %p260 = scmp.eq.s32.totalorder %s259, 0
      %s262 = sadd.s32 %s261, 1
      %s263 = scalar_select %p260, %s261, %s262
      %p266 = pneg %p260
      %p267 = scmp.eq.s32.totalorder %s35, 15
      %p268 = por %p266, %p267
      %p269 = scmp.ne.s32.totalorder %s261, %s264
      %p270 = scmp.eq.s32.totalorder %s35, 0
      %p271 = por %p269, %p270
      %p272 = scmp.ne.s32.totalorder %s261, %s264
      %p273 = scmp.eq.s32.totalorder %s40, 15
      %p274 = por %p272, %p273
      %p275 = scmp.ne.s32.totalorder %s264, %s265
      %p276 = scmp.eq.s32.totalorder %s40, 0
      %p277 = por %p275, %p276
      %p278 = scmp.ne.s32.totalorder %s264, %s265
      %p279 = scmp.eq.s32.totalorder %s41, 15
      %p280 = por %p278, %p279
      %p282 = scmp.ne.s32.totalorder %s265, %s281
      %p283 = scmp.eq.s32.totalorder %s41, 0
      %p284 = por %p282, %p283
      %s286 = sadd.s32 %s285, 1
      %p289 = scmp.eq.s32.totalorder %s35, 15
      %p290 = scmp.ne.s32.totalorder %s285, %s287
      %p291 = scmp.eq.s32.totalorder %s35, 0
      %p292 = por %p290, %p291
      %p293 = scmp.ne.s32.totalorder %s285, %s287
      %p294 = scmp.eq.s32.totalorder %s40, 15
      %p295 = por %p293, %p294
      %p296 = scmp.ne.s32.totalorder %s287, %s288
      %p297 = scmp.eq.s32.totalorder %s40, 0
      %p298 = por %p296, %p297
      %p299 = scmp.ne.s32.totalorder %s287, %s288
      %p300 = scmp.eq.s32.totalorder %s41, 15
      %p301 = por %p299, %p300
      %p303 = scmp.ne.s32.totalorder %s288, %s302
      %p304 = scmp.eq.s32.totalorder %s41, 0
      %p305 = por %p303, %p304
      %s306 = ssub.s32 %s42, %s54
      %s307 = ssub.s32 %s43, %s50
      %s308 = sor.u32 %s306, %s307
      %p309 = scmp.eq.s32.totalorder %s308, 0
      %s311 = sadd.s32 %s310, 1
      %s312 = scalar_select %p309, %s310, %s311
      %p315 = pneg %p309
      %p316 = scmp.eq.s32.totalorder %s35, 15
      %p317 = por %p315, %p316
      %p318 = scmp.ne.s32.totalorder %s310, %s313
      %p319 = scmp.eq.s32.totalorder %s35, 0
      %p320 = por %p318, %p319
      %p321 = scmp.ne.s32.totalorder %s310, %s313
      %p322 = scmp.eq.s32.totalorder %s40, 15
      %p323 = por %p321, %p322
      %p324 = scmp.ne.s32.totalorder %s313, %s314
      %p325 = scmp.eq.s32.totalorder %s40, 0
      %p326 = por %p324, %p325
      %p327 = scmp.ne.s32.totalorder %s313, %s314
      %p328 = scmp.eq.s32.totalorder %s41, 15
      %p329 = por %p327, %p328
      %p331 = scmp.ne.s32.totalorder %s314, %s330
      %p332 = scmp.eq.s32.totalorder %s41, 0
      %p333 = por %p331, %p332
      %p334 = scmp.le.s32.totalorder 1, %s35
      %p335 = scmp.lt.s32.totalorder %s35, 17
      %p336 = pnand %p334, %p335
      %p337 = pneg %p336
      // Predicated region
      $region9: #{tpu_custom_call.1} parent=5 // pred_check
        _
      $region10: #{tpu_custom_call.1} parent=5 // pred_check_branch
        %339 = sbr.rel (%p336) target = $region12
      $region11: #{tpu_custom_call.1} parent=5 // pred_region
        %s340 = ssub.s32 %s35, 1
        // Predicated region
        $region13: #{tpu_custom_call.1} parent=11 // pred_check
          %p341 = pneg %p94
        $region14: #{tpu_custom_call.1} parent=11 // pred_check_branch
          %343 = sbr.rel (%p341) target = $region16
        $region15: #{tpu_custom_call.1} parent=11 // pred_region
          %s345 = ssub.s32 2048, 2048
          %346 = vsyncadd [#allocation12], %s345
          %s347 = sshll.u32 [#allocation11], 4
          %s348 = int_to_ptr.vmem [resolvable:$true] %s347
          %353 = dma.hbm_to_vmem [thread:$0]  %s2, 2048, %s348, [#allocation12], 128, 128, 8
        $region16: #{tpu_custom_call.1} parent=11 // pred_fallthru
          _
        // Predicated region
        $region17: #{tpu_custom_call.1} parent=11 // pred_check
          %p354 = pneg %p115
        $region18: #{tpu_custom_call.1} parent=11 // pred_check_branch
          %356 = sbr.rel (%p354) target = $region20
        $region19: #{tpu_custom_call.1} parent=11 // pred_region
          %s358 = ssub.s32 16, 16
          %359 = vsyncadd [#allocation12], %s358
          %s361 = sshll.u32 [#allocation13], 4
          %s362 = int_to_ptr.vmem [resolvable:$true] %s361
          %364 = dma.hbm_to_vmem [thread:$0]  %s3, 16, %s362, [#allocation12]
        $region20: #{tpu_custom_call.1} parent=11 // pred_fallthru
          _
        // Predicated region
        $region21: #{tpu_custom_call.1} parent=11 // pred_check
          %p365 = pneg %p136
        $region22: #{tpu_custom_call.1} parent=11 // pred_check_branch
          %367 = sbr.rel (%p365) target = $region24
        $region23: #{tpu_custom_call.1} parent=11 // pred_region
          %s369 = ssub.s32 2048, 2048
          %370 = vsyncadd [#allocation15], %s369
          %s371 = sshll.u32 [#allocation14], 4
          %s372 = int_to_ptr.vmem [resolvable:$true] %s371
          %377 = dma.hbm_to_vmem [thread:$0]  %s4, 2048, %s372, [#allocation15], 128, 128, 8
        $region24: #{tpu_custom_call.1} parent=11 // pred_fallthru
          _
        // Predicated region
        $region25: #{tpu_custom_call.1} parent=11 // pred_check
          %p378 = pneg %p157
        $region26: #{tpu_custom_call.1} parent=11 // pred_check_branch
          %380 = sbr.rel (%p378) target = $region28
        $region27: #{tpu_custom_call.1} parent=11 // pred_region
          %s382 = ssub.s32 16, 16
          %383 = vsyncadd [#allocation15], %s382
          %s385 = sshll.u32 [#allocation16], 4
          %s386 = int_to_ptr.vmem [resolvable:$true] %s385
          %388 = dma.hbm_to_vmem [thread:$0]  %s5, 16, %s386, [#allocation15]
        $region28: #{tpu_custom_call.1} parent=11 // pred_fallthru
          _
        // Predicated region
        $region29: #{tpu_custom_call.1} parent=11 // pred_check
          %p389 = pneg %p178
        $region30: #{tpu_custom_call.1} parent=11 // pred_check_branch
          %391 = sbr.rel (%p389) target = $region32
        $region31: #{tpu_custom_call.1} parent=11 // pred_region
          %s393 = ssub.s32 16, 16
          %394 = vsyncadd [#allocation18], %s393
          %s396 = sshll.u32 [#allocation17], 4
          %s397 = int_to_ptr.vmem [resolvable:$true] %s396
          %399 = dma.hbm_to_vmem [thread:$0]  %s6, 16, %s397, [#allocation18]
        $region32: #{tpu_custom_call.1} parent=11 // pred_fallthru
          _
        // Predicated region
        $region33: #{tpu_custom_call.1} parent=11 // pred_check
          %p400 = pneg %p199
        $region34: #{tpu_custom_call.1} parent=11 // pred_check_branch
          %402 = sbr.rel (%p400) target = $region36
        $region35: #{tpu_custom_call.1} parent=11 // pred_region
          %s404 = ssub.s32 16, 16
          %405 = vsyncadd [#allocation18], %s404
          %s407 = sshll.u32 [#allocation19], 4
          %s408 = int_to_ptr.vmem [resolvable:$true] %s407
          %410 = dma.hbm_to_vmem [thread:$0]  %s7, 16, %s408, [#allocation18]
        $region36: #{tpu_custom_call.1} parent=11 // pred_fallthru
          _
        // Predicated region
        $region37: #{tpu_custom_call.1} parent=11 // pred_check
          %p411 = pneg %p298
        $region38: #{tpu_custom_call.1} parent=11 // pred_check_branch
          %413 = sbr.rel (%p411) target = $region40
        $region39: #{tpu_custom_call.1} parent=11 // pred_region
          %s415 = ssub.s32 16, 16
          %416 = vsyncadd [#allocation10], %s415
          %s418 = sshll.u32 %s11, 4
          %s419 = int_to_ptr.vmem [resolvable:$true] %s418
          %421 = dma.vmem_to_smem %s419, 16, [#allocation22], [#allocation10]
        $region40: #{tpu_custom_call.1} parent=11 // pred_fallthru
          _
      $region12: #{tpu_custom_call.1} parent=5 // pred_fallthru
        _
      %p422 = scmp.lt.s32.totalorder %s35, 16
      // Predicated region
      $region41: #{tpu_custom_call.1} parent=5 // pred_check
        %p423 = pneg %p422
      $region42: #{tpu_custom_call.1} parent=5 // pred_check_branch
        %425 = sbr.rel (%p423) target = $region44
      $region43: #{tpu_custom_call.1} parent=5 // pred_region
        // Predicated region
        $region45: #{tpu_custom_call.1} parent=43 // pred_check
          %p426 = pneg %p67
        $region46: #{tpu_custom_call.1} parent=43 // pred_check_branch
          %428 = sbr.rel (%p426) target = $region48
        $region47: #{tpu_custom_call.1} parent=43 // pred_region
          %s429 = sand.u32 %s57, 1
          %s430 = scalar_lea.sflag [#allocation8], %s429
          %s431 = sand.u32 %s57, 1
          %s432 = smul.addr %s431, 128
          %s433 = scalar_lea.vmem [#allocation7], %s432
          %s435 = ssub.s32 2048, 2048
          %436 = vsyncadd %s430, %s435
          %s437 = smul.addr %s42, 16
          %s438 = smul.addr %s437, 128
          %s439 = scalar_lea.hbm %s1, %s438
          %s440 = sshll.u32 %s433, 4
          %s441 = int_to_ptr.vmem [resolvable:$true] %s440
          %446 = dma.hbm_to_vmem [thread:$0]  %s439, 2048, %s441, %s430, 128, 128, 8
        $region48: #{tpu_custom_call.1} parent=43 // pred_fallthru
          _
        // Predicated region
        $region49: #{tpu_custom_call.1} parent=43 // pred_check
          %p447 = pneg %p219
        $region50: #{tpu_custom_call.1} parent=43 // pred_check_branch
          %449 = sbr.rel (%p447) target = $region52
        $region51: #{tpu_custom_call.1} parent=43 // pred_region
          %p450 = scmp.lt.s32.totalorder %s43, 7
          %s451 = scalar_select %p450, %s43, 7
          %s452 = scalar_lea.vmem %s8, %s451
        $region52: #{tpu_custom_call.1} parent=43 // pred_fallthru
          _
        // Predicated region
        $region53: #{tpu_custom_call.1} parent=43 // pred_check
          %p453 = pneg %p245
        $region54: #{tpu_custom_call.1} parent=43 // pred_check_branch
          %455 = sbr.rel (%p453) target = $region56
        $region55: #{tpu_custom_call.1} parent=43 // pred_region
          %p456 = scmp.lt.s32.totalorder %s43, 7
          %s457 = scalar_select %p456, %s43, 7
          %s458 = scalar_lea.vmem %s9, %s457
        $region56: #{tpu_custom_call.1} parent=43 // pred_fallthru
          _
        // Predicated region
        $region57: #{tpu_custom_call.1} parent=43 // pred_check
          %p459 = pneg %p271
        $region58: #{tpu_custom_call.1} parent=43 // pred_check_branch
          %461 = sbr.rel (%p459) target = $region60
        $region59: #{tpu_custom_call.1} parent=43 // pred_region
          %s462 = sand.u32 %s261, 1
          %s463 = scalar_lea.sflag [#allocation21], %s462
          %s464 = sand.u32 %s261, 1
          %s465 = smul.addr %s464, 128
          %s466 = scalar_lea.vmem [#allocation20], %s465
          %s468 = ssub.s32 2048, 2048
          %469 = vsyncadd %s463, %s468
          %s470 = smul.addr %s43, 16
          %s471 = smul.addr %s470, 128
          %s472 = scalar_lea.hbm %s10, %s471
          %s473 = sshll.u32 %s466, 4
          %s474 = int_to_ptr.vmem [resolvable:$true] %s473
          %479 = dma.hbm_to_vmem [thread:$0]  %s472, 2048, %s474, %s463, 128, 128, 8
        $region60: #{tpu_custom_call.1} parent=43 // pred_fallthru
          _
      $region44: #{tpu_custom_call.1} parent=5 // pred_fallthru
        _
      %p480 = scmp.le.s32.totalorder 1, %s35
      %p481 = scmp.lt.s32.totalorder %s35, 17
      %p482 = pnand %p480, %p481
      %p483 = pneg %p482
      // Predicated region
      $region61: #{tpu_custom_call.1} parent=5 // pred_check
        _
      $region62: #{tpu_custom_call.1} parent=5 // pred_check_branch
        %485 = sbr.rel (%p482) target = $region64
      $region63: #{tpu_custom_call.1} parent=5 // pred_region
        %s486 = ssub.s32 %s35, 1
        %s487 = sand.u32 %s60, 1
        %s488 = scalar_lea.sflag [#allocation8], %s487
        %s489 = sand.u32 %s60, 1
        %s490 = smul.addr %s489, 128
        %s491 = scalar_lea.vmem [#allocation7], %s490
        // Predicated region
        $region65: #{tpu_custom_call.1} parent=63 // pred_check
          %p492 = pneg %p73
        $region66: #{tpu_custom_call.1} parent=63 // pred_check_branch
          %494 = sbr.rel (%p492) target = $region68
        $region67: #{tpu_custom_call.1} parent=63 // pred_region
          %495 = dma.done %s488, 2048
        $region68: #{tpu_custom_call.1} parent=63 // pred_fallthru
          _
        // Predicated region
        $region69: #{tpu_custom_call.1} parent=63 // pred_check
          %p496 = pneg %p94
        $region70: #{tpu_custom_call.1} parent=63 // pred_check_branch
          %498 = sbr.rel (%p496) target = $region72
        $region71: #{tpu_custom_call.1} parent=63 // pred_region
          %499 = dma.done [#allocation12], 2048
        $region72: #{tpu_custom_call.1} parent=63 // pred_fallthru
          _
        // Predicated region
        $region73: #{tpu_custom_call.1} parent=63 // pred_check
          %p500 = pneg %p115
        $region74: #{tpu_custom_call.1} parent=63 // pred_check_branch
          %502 = sbr.rel (%p500) target = $region76
        $region75: #{tpu_custom_call.1} parent=63 // pred_region
          %503 = dma.done [#allocation12], 16
        $region76: #{tpu_custom_call.1} parent=63 // pred_fallthru
          _
        // Predicated region
        $region77: #{tpu_custom_call.1} parent=63 // pred_check
          %p504 = pneg %p136
        $region78: #{tpu_custom_call.1} parent=63 // pred_check_branch
          %506 = sbr.rel (%p504) target = $region80
        $region79: #{tpu_custom_call.1} parent=63 // pred_region
          %507 = dma.done [#allocation15], 2048
        $region80: #{tpu_custom_call.1} parent=63 // pred_fallthru
          _
        // Predicated region
        $region81: #{tpu_custom_call.1} parent=63 // pred_check
          %p508 = pneg %p157
        $region82: #{tpu_custom_call.1} parent=63 // pred_check_branch
          %510 = sbr.rel (%p508) target = $region84
        $region83: #{tpu_custom_call.1} parent=63 // pred_region
          %511 = dma.done [#allocation15], 16
        $region84: #{tpu_custom_call.1} parent=63 // pred_fallthru
          _
        // Predicated region
        $region85: #{tpu_custom_call.1} parent=63 // pred_check
          %p512 = pneg %p178
        $region86: #{tpu_custom_call.1} parent=63 // pred_check_branch
          %514 = sbr.rel (%p512) target = $region88
        $region87: #{tpu_custom_call.1} parent=63 // pred_region
          %515 = dma.done [#allocation18], 16
        $region88: #{tpu_custom_call.1} parent=63 // pred_fallthru
          _
        // Predicated region
        $region89: #{tpu_custom_call.1} parent=63 // pred_check
          %p516 = pneg %p199
        $region90: #{tpu_custom_call.1} parent=63 // pred_check_branch
          %518 = sbr.rel (%p516) target = $region92
        $region91: #{tpu_custom_call.1} parent=63 // pred_region
          %519 = dma.done [#allocation18], 16
        $region92: #{tpu_custom_call.1} parent=63 // pred_fallthru
          _
        %s520 = sand.u32 %s264, 1
        %s521 = scalar_lea.sflag [#allocation21], %s520
        %s522 = sand.u32 %s264, 1
        %s523 = smul.addr %s522, 128
        %s524 = scalar_lea.vmem [#allocation20], %s523
        // Predicated region
        $region93: #{tpu_custom_call.1} parent=63 // pred_check
          %p525 = pneg %p277
        $region94: #{tpu_custom_call.1} parent=63 // pred_check_branch
          %527 = sbr.rel (%p525) target = $region96
        $region95: #{tpu_custom_call.1} parent=63 // pred_region
          %528 = dma.done %s521, 2048
        $region96: #{tpu_custom_call.1} parent=63 // pred_fallthru
          _
        // Predicated region
        $region97: #{tpu_custom_call.1} parent=63 // pred_check
          %p529 = pneg %p298
        $region98: #{tpu_custom_call.1} parent=63 // pred_check_branch
          %531 = sbr.rel (%p529) target = $region100
        $region99: #{tpu_custom_call.1} parent=63 // pred_region
          %532 = dma.done [#allocation10], 16
        $region100: #{tpu_custom_call.1} parent=63 // pred_fallthru
          _
        %533 = sfence
        %s534 = sand.u32 %s60, 1
        %s535 = scalar_lea.sflag [#allocation8], %s534
        %s536 = sand.u32 %s60, 1
        %s537 = smul.addr %s536, 128
        %s538 = scalar_lea.vmem [#allocation7], %s537
        %p539 = pneg %p73
        %p540 = pneg %p70
        %p541 = pneg %p94
        %p542 = pneg %p91
        %p543 = pneg %p115
        %p544 = pneg %p112
        %p545 = pneg %p136
        %p546 = pneg %p133
        %p547 = pneg %p157
        %p548 = pneg %p154
        %p549 = pneg %p178
        %p550 = pneg %p175
        %p551 = pneg %p199
        %p552 = pneg %p196
        %p553 = scmp.lt.s32.totalorder %s45, 7
        %s554 = scalar_select %p553, %s45, 7
        %s555 = scalar_lea.vmem %s8, %s554
        %p556 = pneg %p225
        %p557 = pneg %p222
        %p558 = scmp.lt.s32.totalorder %s45, 7
        %s559 = scalar_select %p558, %s45, 7
        %s560 = scalar_lea.vmem %s9, %s559
        %p561 = pneg %p251
        %p562 = pneg %p248
        %s563 = sand.u32 %s264, 1
        %s564 = scalar_lea.sflag [#allocation21], %s563
        %s565 = sand.u32 %s264, 1
        %s566 = smul.addr %s565, 128
        %s567 = scalar_lea.vmem [#allocation20], %s566
        %p568 = pneg %p277
        %p569 = pneg %p274
        %p570 = pneg %p298
        %p571 = pneg %p295
        %p572 = pneg %p326
        %p573 = pneg %p323
        %s574 = sand.u32 %s313, 1
        %s575 = scalar_lea.sflag [#allocation9], %s574
        %s576 = sand.u32 %s313, 1
        %s577 = smul.addr %s576, 8
        %s578 = scalar_lea.vmem [#allocation23], %s577
        %p579 = scmp.lt.s32.totalorder %s45, 7
        %s580 = scalar_select %p579, %s45, 7
        %s581 = scalar_lea.vmem %s8, %s580
        %p582 = scmp.lt.s32.totalorder %s45, 7
        %s583 = scalar_select %p582, %s45, 7
        %s584 = scalar_lea.vmem %s9, %s583
        %v585 = vld [vmem:[%s491] sm:$0xff]
        %v586 = vld [vmem:[%s491 + $0x8] sm:$0xff]
        %v587 = vld [vmem:[%s491 + $0x10] sm:$0xff]
        %v588 = vld [vmem:[%s491 + $0x18] sm:$0xff]
        %v589 = vld [vmem:[%s491 + $0x20] sm:$0xff]
        %v590 = vld [vmem:[%s491 + $0x28] sm:$0xff]
        %v591 = vld [vmem:[%s491 + $0x30] sm:$0xff]
        %v592 = vld [vmem:[%s491 + $0x38] sm:$0xff]
        %v593 = vld [vmem:[%s491 + $0x40] sm:$0xff]
        %v594 = vld [vmem:[%s491 + $0x48] sm:$0xff]
        %v595 = vld [vmem:[%s491 + $0x50] sm:$0xff]
        %v596 = vld [vmem:[%s491 + $0x58] sm:$0xff]
        %v597 = vld [vmem:[%s491 + $0x60] sm:$0xff]
        %v598 = vld [vmem:[%s491 + $0x68] sm:$0xff]
        %v599 = vld [vmem:[%s491 + $0x70] sm:$0xff]
        %v600 = vld [vmem:[%s491 + $0x78] sm:$0xff]
        %p601 = scmp.eq.s32.totalorder %s45, 0
        // Predicated region
        $region101: #{tpu_custom_call.1} parent=63 // pred_check
          %p602 = pneg %p601
        $region102: #{tpu_custom_call.1} parent=63 // pred_check_branch
          %604 = sbr.rel (%p602) target = $region104
        $region103: #{tpu_custom_call.1} parent=63 // pred_region
          %v605 = vlaneseq
          %v606 = vand.u32 %v605, 127
          %v607 = vlaneseq
          %v608 = vshrl.u32 %v607, 7
          %vm609 = vcmp.eq.s32.totalorder %v608, 0
          %s610 = smul.u32 %s44, 128
          %s611 = sld [smem:[#allocation6 + %s610]]
          %v612 = vstv %s611
          %v613 = vsel %vm609, %v612, 0
          %vm614 = vcmp.eq.s32.totalorder %v608, 1
          %s615 = sadd.s32 %s610, 1
          %s616 = sld [smem:[#allocation6 + %s615]]
          %v617 = vstv %s616
          %v618 = vsel %vm614, %v617, %v613
          %vm619 = vcmp.eq.s32.totalorder %v608, 2
          %s620 = sadd.s32 %s610, 2
          %s621 = sld [smem:[#allocation6 + %s620]]
          %v622 = vstv %s621
          %v623 = vsel %vm619, %v622, %v618
          %vm624 = vcmp.eq.s32.totalorder %v608, 3
          %s625 = sadd.s32 %s610, 3
          %s626 = sld [smem:[#allocation6 + %s625]]
          %v627 = vstv %s626
          %v628 = vsel %vm624, %v627, %v623
          %vm629 = vcmp.eq.s32.totalorder %v608, 4
          %s630 = sadd.s32 %s610, 4
          %s631 = sld [smem:[#allocation6 + %s630]]
          %v632 = vstv %s631
          %v633 = vsel %vm629, %v632, %v628
          %vm634 = vcmp.eq.s32.totalorder %v608, 5
          %s635 = sadd.s32 %s610, 5
          %s636 = sld [smem:[#allocation6 + %s635]]
          %v637 = vstv %s636
          %v638 = vsel %vm634, %v637, %v633
          %vm639 = vcmp.eq.s32.totalorder %v608, 6
          %s640 = sadd.s32 %s610, 6
          %s641 = sld [smem:[#allocation6 + %s640]]
          %v642 = vstv %s641
          %v643 = vsel %vm639, %v642, %v638
          %vm644 = vcmp.eq.s32.totalorder %v608, 7
          %s645 = sadd.s32 %s610, 7
          %s646 = sld [smem:[#allocation6 + %s645]]
          %v647 = vstv %s646
          %v648 = vsel %vm644, %v647, %v643
          %vm649 = vcmp.eq.s32.totalorder %v606, %v648
          %v650 = vsel %vm649, 1, 0
          %v651 = vcvt.s32.f32 %v650
          %652 = vmatprep.subr.mxu0 0.0
          %653 = vmatpush1.msra.mxu0 %v600
          %654 = vmatprep.subr.mxu0 0.0
          %655 = vmatpush1.msra.mxu0 %v599
          %656 = vmatprep.subr.mxu0 0.0
          %657 = vmatpush1.msra.mxu0 %v598
          %658 = vmatprep.subr.mxu0 0.0
          %659 = vmatpush1.msra.mxu0 %v597
          %660 = vmatprep.subr.mxu0 0.0
          %661 = vmatpush1.msra.mxu0 %v596
          %662 = vmatprep.subr.mxu0 0.0
          %663 = vmatpush1.msra.mxu0 %v595
          %664 = vmatprep.subr.mxu0 0.0
          %665 = vmatpush1.msra.mxu0 %v594
          %666 = vmatprep.subr.mxu0 0.0
          %667 = vmatpush1.msra.mxu0 %v593
          %668 = vmatprep.subr.mxu0 0.0
          %669 = vmatpush1.msra.mxu0 %v592
          %670 = vmatprep.subr.mxu0 0.0
          %671 = vmatpush1.msra.mxu0 %v591
          %672 = vmatprep.subr.mxu0 0.0
          %673 = vmatpush1.msra.mxu0 %v590
          %674 = vmatprep.subr.mxu0 0.0
          %675 = vmatpush1.msra.mxu0 %v589
          %676 = vmatprep.subr.mxu0 0.0
          %677 = vmatpush1.msra.mxu0 %v588
          %678 = vmatprep.subr.mxu0 0.0
          %679 = vmatpush1.msra.mxu0 %v587
          %680 = vmatprep.subr.mxu0 0.0
          %681 = vmatpush1.msra.mxu0 %v586
          %682 = vmatprep.subr.mxu0 0.0
          %683 = vmatpush1.msra.mxu0 %v585
          %684 = vmatprep.subr.mxu0 0.0
          %685 = vmatpush2.msra.mxu0 0.0
          %686 = vmatprep.subr.mxu0 0.0
          %687 = vmatpush2.msra.mxu0 0.0
          %688 = vmatprep.subr.mxu0 0.0
          %689 = vmatpush2.msra.mxu0 0.0
          %690 = vmatprep.subr.mxu0 0.0
          %691 = vmatpush2.msra.mxu0 0.0
          %692 = vmatprep.subr.mxu0 0.0
          %693 = vmatpush2.msra.mxu0 0.0
          %694 = vmatprep.subr.mxu0 0.0
          %695 = vmatpush2.msra.mxu0 0.0
          %696 = vmatprep.subr.mxu0 0.0
          %697 = vmatpush2.msra.mxu0 0.0
          %698 = vmatprep.subr.mxu0 0.0
          %699 = vmatpush2.msra.mxu0 0.0
          %700 = vmatprep.subr.mxu0 0.0
          %701 = vmatpush2.msra.mxu0 0.0
          %702 = vmatprep.subr.mxu0 0.0
          %703 = vmatpush2.msra.mxu0 0.0
          %704 = vmatprep.subr.mxu0 0.0
          %705 = vmatpush2.msra.mxu0 0.0
          %706 = vmatprep.subr.mxu0 0.0
          %707 = vmatpush2.msra.mxu0 0.0
          %708 = vmatprep.subr.mxu0 0.0
          %709 = vmatpush2.msra.mxu0 0.0
          %710 = vmatprep.subr.mxu0 0.0
          %711 = vmatpush2.msra.mxu0 0.0
          %712 = vmatprep.subr.mxu0 0.0
          %713 = vmatpush2.msra.mxu0 0.0
          %714 = vmatprep.subr.mxu0 0.0
          %715 = vmatpush2.msra.mxu0 0.0
          %716 = vmatprep.mubr.f32.mxu0 0.0
          %717 = vmatmul.mubr.f32.gmra.mxu0 %v651
          %v718 = vpop.f32.mrf.mxu0
          %v719 = vadd.f32 0.0, %v718
          %v720 = vpop.f32.mrf.mxu0
          %721 = vdwg.mxu0
          %722 = vst [vmem:[#allocation2] sm:$0xff] %v719
          %v723 = vld [vmem:[#allocation11] sm:$0xff]
          %v724 = vld [vmem:[#allocation11 + $0x8] sm:$0xff]
          %v725 = vld [vmem:[#allocation11 + $0x10] sm:$0xff]
          %v726 = vld [vmem:[#allocation11 + $0x18] sm:$0xff]
          %v727 = vld [vmem:[#allocation11 + $0x20] sm:$0xff]
          %v728 = vld [vmem:[#allocation11 + $0x28] sm:$0xff]
          %v729 = vld [vmem:[#allocation11 + $0x30] sm:$0xff]
          %v730 = vld [vmem:[#allocation11 + $0x38] sm:$0xff]
          %v731 = vld [vmem:[#allocation11 + $0x40] sm:$0xff]
          %v732 = vld [vmem:[#allocation11 + $0x48] sm:$0xff]
          %v733 = vld [vmem:[#allocation11 + $0x50] sm:$0xff]
          %v734 = vld [vmem:[#allocation11 + $0x58] sm:$0xff]
          %v735 = vld [vmem:[#allocation11 + $0x60] sm:$0xff]
          %v736 = vld [vmem:[#allocation11 + $0x68] sm:$0xff]
          %v737 = vld [vmem:[#allocation11 + $0x70] sm:$0xff]
          %v738 = vld [vmem:[#allocation11 + $0x78] sm:$0xff]
          %v739 = vld [vmem:[#allocation13] sm:$0x1]
          %v741 = vlaneseq
          %v742 = vshrl.u32 %v741, 7
          %v743 = vsub.s32 0, %v742
          %v744 = vrot.slane %v739, %v743
          %746 = vmatprep.subr.mxu0 0.0
          %747 = vmatpush1.msra.mxu0 %v738
          %748 = vmatprep.subr.mxu0 0.0
          %749 = vmatpush1.msra.mxu0 %v737
          %750 = vmatprep.subr.mxu0 0.0
          %751 = vmatpush1.msra.mxu0 %v736
          %752 = vmatprep.subr.mxu0 0.0
          %753 = vmatpush1.msra.mxu0 %v735
          %754 = vmatprep.subr.mxu0 0.0
          %755 = vmatpush1.msra.mxu0 %v734
          %756 = vmatprep.subr.mxu0 0.0
          %757 = vmatpush1.msra.mxu0 %v733
          %758 = vmatprep.subr.mxu0 0.0
          %759 = vmatpush1.msra.mxu0 %v732
          %760 = vmatprep.subr.mxu0 0.0
          %761 = vmatpush1.msra.mxu0 %v731
          %762 = vmatprep.subr.mxu0 0.0
          %763 = vmatpush1.msra.mxu0 %v730
          %764 = vmatprep.subr.mxu0 0.0
          %765 = vmatpush1.msra.mxu0 %v729
          %766 = vmatprep.subr.mxu0 0.0
          %767 = vmatpush1.msra.mxu0 %v728
          %768 = vmatprep.subr.mxu0 0.0
          %769 = vmatpush1.msra.mxu0 %v727
          %770 = vmatprep.subr.mxu0 0.0
          %771 = vmatpush1.msra.mxu0 %v726
          %772 = vmatprep.subr.mxu0 0.0
          %773 = vmatpush1.msra.mxu0 %v725
          %774 = vmatprep.subr.mxu0 0.0
          %775 = vmatpush1.msra.mxu0 %v724
          %776 = vmatprep.subr.mxu0 0.0
          %777 = vmatpush1.msra.mxu0 %v723
          %778 = vmatprep.subr.mxu0 0.0
          %779 = vmatpush2.msra.mxu0 0.0
          %780 = vmatprep.subr.mxu0 0.0
          %781 = vmatpush2.msra.mxu0 0.0
          %782 = vmatprep.subr.mxu0 0.0
          %783 = vmatpush2.msra.mxu0 0.0
          %784 = vmatprep.subr.mxu0 0.0
          %785 = vmatpush2.msra.mxu0 0.0
          %786 = vmatprep.subr.mxu0 0.0
          %787 = vmatpush2.msra.mxu0 0.0
          %788 = vmatprep.subr.mxu0 0.0
          %789 = vmatpush2.msra.mxu0 0.0
          %790 = vmatprep.subr.mxu0 0.0
          %791 = vmatpush2.msra.mxu0 0.0
          %792 = vmatprep.subr.mxu0 0.0
          %793 = vmatpush2.msra.mxu0 0.0
          %794 = vmatprep.subr.mxu0 0.0
          %795 = vmatpush2.msra.mxu0 0.0
          %796 = vmatprep.subr.mxu0 0.0
          %797 = vmatpush2.msra.mxu0 0.0
          %798 = vmatprep.subr.mxu0 0.0
          %799 = vmatpush2.msra.mxu0 0.0
          %800 = vmatprep.subr.mxu0 0.0
          %801 = vmatpush2.msra.mxu0 0.0
          %802 = vmatprep.subr.mxu0 0.0
          %803 = vmatpush2.msra.mxu0 0.0
          %804 = vmatprep.subr.mxu0 0.0
          %805 = vmatpush2.msra.mxu0 0.0
          %806 = vmatprep.subr.mxu0 0.0
          %807 = vmatpush2.msra.mxu0 0.0
          %808 = vmatprep.subr.mxu0 0.0
          %809 = vmatpush2.msra.mxu0 0.0
          %810 = vmatprep.mubr.f32.mxu0 0.0
          %811 = vmatmul.mubr.f32.gmra.mxu0 %v719
          %v812 = vpop.f32.mrf.mxu0
          %v813 = vadd.f32 %v744, %v812
          %v814 = vpop.f32.mrf.mxu0
          %815 = vdwg.mxu0
          %v816 = vmax.f32 %v813, 0.0
          %v817 = vld [vmem:[#allocation17] sm:$0x1]
          %v819 = vlaneseq
          %v820 = vshrl.u32 %v819, 7
          %v821 = vsub.s32 0, %v820
          %v822 = vrot.slane %v817, %v821
          %v824 = vmul.f32 %v816, %v822
          %825 = vadd.xlane.f32.xlu0 %v824
          %v826 = vpop.xlane.xlu0 %825
          %vm827 = vcmask 7168
          %828 = vst.msk [vmem:[#allocation3] sm:$0xff] %vm827, %v826
          %v829 = vld [vmem:[#allocation14] sm:$0xff]
          %v830 = vld [vmem:[#allocation14 + $0x8] sm:$0xff]
          %v831 = vld [vmem:[#allocation14 + $0x10] sm:$0xff]
          %v832 = vld [vmem:[#allocation14 + $0x18] sm:$0xff]
          %v833 = vld [vmem:[#allocation14 + $0x20] sm:$0xff]
          %v834 = vld [vmem:[#allocation14 + $0x28] sm:$0xff]
          %v835 = vld [vmem:[#allocation14 + $0x30] sm:$0xff]
          %v836 = vld [vmem:[#allocation14 + $0x38] sm:$0xff]
          %v837 = vld [vmem:[#allocation14 + $0x40] sm:$0xff]
          %v838 = vld [vmem:[#allocation14 + $0x48] sm:$0xff]
          %v839 = vld [vmem:[#allocation14 + $0x50] sm:$0xff]
          %v840 = vld [vmem:[#allocation14 + $0x58] sm:$0xff]
          %v841 = vld [vmem:[#allocation14 + $0x60] sm:$0xff]
          %v842 = vld [vmem:[#allocation14 + $0x68] sm:$0xff]
          %v843 = vld [vmem:[#allocation14 + $0x70] sm:$0xff]
          %v844 = vld [vmem:[#allocation14 + $0x78] sm:$0xff]
          %v845 = vld [vmem:[#allocation16] sm:$0x1]
          %v847 = vlaneseq
          %v848 = vshrl.u32 %v847, 7
          %v849 = vsub.s32 0, %v848
          %v850 = vrot.slane %v845, %v849
          %852 = vmatprep.subr.mxu0 0.0
          %853 = vmatpush1.msra.mxu0 %v844
          %854 = vmatprep.subr.mxu0 0.0
          %855 = vmatpush1.msra.mxu0 %v843
          %856 = vmatprep.subr.mxu0 0.0
          %857 = vmatpush1.msra.mxu0 %v842
          %858 = vmatprep.subr.mxu0 0.0
          %859 = vmatpush1.msra.mxu0 %v841
          %860 = vmatprep.subr.mxu0 0.0
          %861 = vmatpush1.msra.mxu0 %v840
          %862 = vmatprep.subr.mxu0 0.0
          %863 = vmatpush1.msra.mxu0 %v839
          %864 = vmatprep.subr.mxu0 0.0
          %865 = vmatpush1.msra.mxu0 %v838
          %866 = vmatprep.subr.mxu0 0.0
          %867 = vmatpush1.msra.mxu0 %v837
          %868 = vmatprep.subr.mxu0 0.0
          %869 = vmatpush1.msra.mxu0 %v836
          %870 = vmatprep.subr.mxu0 0.0
          %871 = vmatpush1.msra.mxu0 %v835
          %872 = vmatprep.subr.mxu0 0.0
          %873 = vmatpush1.msra.mxu0 %v834
          %874 = vmatprep.subr.mxu0 0.0
          %875 = vmatpush1.msra.mxu0 %v833
          %876 = vmatprep.subr.mxu0 0.0
          %877 = vmatpush1.msra.mxu0 %v832
          %878 = vmatprep.subr.mxu0 0.0
          %879 = vmatpush1.msra.mxu0 %v831
          %880 = vmatprep.subr.mxu0 0.0
          %881 = vmatpush1.msra.mxu0 %v830
          %882 = vmatprep.subr.mxu0 0.0
          %883 = vmatpush1.msra.mxu0 %v829
          %884 = vmatprep.subr.mxu0 0.0
          %885 = vmatpush2.msra.mxu0 0.0
          %886 = vmatprep.subr.mxu0 0.0
          %887 = vmatpush2.msra.mxu0 0.0
          %888 = vmatprep.subr.mxu0 0.0
          %889 = vmatpush2.msra.mxu0 0.0
          %890 = vmatprep.subr.mxu0 0.0
          %891 = vmatpush2.msra.mxu0 0.0
          %892 = vmatprep.subr.mxu0 0.0
          %893 = vmatpush2.msra.mxu0 0.0
          %894 = vmatprep.subr.mxu0 0.0
          %895 = vmatpush2.msra.mxu0 0.0
          %896 = vmatprep.subr.mxu0 0.0
          %897 = vmatpush2.msra.mxu0 0.0
          %898 = vmatprep.subr.mxu0 0.0
          %899 = vmatpush2.msra.mxu0 0.0
          %900 = vmatprep.subr.mxu0 0.0
          %901 = vmatpush2.msra.mxu0 0.0
          %902 = vmatprep.subr.mxu0 0.0
          %903 = vmatpush2.msra.mxu0 0.0
          %904 = vmatprep.subr.mxu0 0.0
          %905 = vmatpush2.msra.mxu0 0.0
          %906 = vmatprep.subr.mxu0 0.0
          %907 = vmatpush2.msra.mxu0 0.0
          %908 = vmatprep.subr.mxu0 0.0
          %909 = vmatpush2.msra.mxu0 0.0
          %910 = vmatprep.subr.mxu0 0.0
          %911 = vmatpush2.msra.mxu0 0.0
          %912 = vmatprep.subr.mxu0 0.0
          %913 = vmatpush2.msra.mxu0 0.0
          %914 = vmatprep.subr.mxu0 0.0
          %915 = vmatpush2.msra.mxu0 0.0
          %916 = vmatprep.mubr.f32.mxu0 0.0
          %917 = vmatmul.mubr.f32.gmra.mxu0 %v585
          %v918 = vpop.f32.mrf.mxu0
          %v919 = vadd.f32 %v850, %v918
          %v920 = vpop.f32.mrf.mxu0
          %921 = vmatprep.mubr.f32.mxu0 0.0
          %922 = vmatmul.mubr.f32.gmra.mxu0 %v586
          %v923 = vpop.f32.mrf.mxu0
          %v924 = vadd.f32 %v850, %v923
          %v925 = vpop.f32.mrf.mxu0
          %926 = vmatprep.mubr.f32.mxu0 0.0
          %927 = vmatmul.mubr.f32.gmra.mxu0 %v587
          %v928 = vpop.f32.mrf.mxu0
          %v929 = vadd.f32 %v850, %v928
          %v930 = vpop.f32.mrf.mxu0
          %931 = vmatprep.mubr.f32.mxu0 0.0
          %932 = vmatmul.mubr.f32.gmra.mxu0 %v588
          %v933 = vpop.f32.mrf.mxu0
          %v934 = vadd.f32 %v850, %v933
          %v935 = vpop.f32.mrf.mxu0
          %936 = vmatprep.mubr.f32.mxu0 0.0
          %937 = vmatmul.mubr.f32.gmra.mxu0 %v589
          %v938 = vpop.f32.mrf.mxu0
          %v939 = vadd.f32 %v850, %v938
          %v940 = vpop.f32.mrf.mxu0
          %941 = vmatprep.mubr.f32.mxu0 0.0
          %942 = vmatmul.mubr.f32.gmra.mxu0 %v590
          %v943 = vpop.f32.mrf.mxu0
          %v944 = vadd.f32 %v850, %v943
          %v945 = vpop.f32.mrf.mxu0
          %946 = vmatprep.mubr.f32.mxu0 0.0
          %947 = vmatmul.mubr.f32.gmra.mxu0 %v591
          %v948 = vpop.f32.mrf.mxu0
          %v949 = vadd.f32 %v850, %v948
          %v950 = vpop.f32.mrf.mxu0
          %951 = vmatprep.mubr.f32.mxu0 0.0
          %952 = vmatmul.mubr.f32.gmra.mxu0 %v592
          %v953 = vpop.f32.mrf.mxu0
          %v954 = vadd.f32 %v850, %v953
          %v955 = vpop.f32.mrf.mxu0
          %956 = vmatprep.mubr.f32.mxu0 0.0
          %957 = vmatmul.mubr.f32.gmra.mxu0 %v593
          %v958 = vpop.f32.mrf.mxu0
          %v959 = vadd.f32 %v850, %v958
          %v960 = vpop.f32.mrf.mxu0
          %961 = vmatprep.mubr.f32.mxu0 0.0
          %962 = vmatmul.mubr.f32.gmra.mxu0 %v594
          %v963 = vpop.f32.mrf.mxu0
          %v964 = vadd.f32 %v850, %v963
          %v965 = vpop.f32.mrf.mxu0
          %966 = vmatprep.mubr.f32.mxu0 0.0
          %967 = vmatmul.mubr.f32.gmra.mxu0 %v595
          %v968 = vpop.f32.mrf.mxu0
          %v969 = vadd.f32 %v850, %v968
          %v970 = vpop.f32.mrf.mxu0
          %971 = vmatprep.mubr.f32.mxu0 0.0
          %972 = vmatmul.mubr.f32.gmra.mxu0 %v596
          %v973 = vpop.f32.mrf.mxu0
          %v974 = vadd.f32 %v850, %v973
          %v975 = vpop.f32.mrf.mxu0
          %976 = vmatprep.mubr.f32.mxu0 0.0
          %977 = vmatmul.mubr.f32.gmra.mxu0 %v597
          %v978 = vpop.f32.mrf.mxu0
          %v979 = vadd.f32 %v850, %v978
          %v980 = vpop.f32.mrf.mxu0
          %981 = vmatprep.mubr.f32.mxu0 0.0
          %982 = vmatmul.mubr.f32.gmra.mxu0 %v598
          %v983 = vpop.f32.mrf.mxu0
          %v984 = vadd.f32 %v850, %v983
          %v985 = vpop.f32.mrf.mxu0
          %986 = vmatprep.mubr.f32.mxu0 0.0
          %987 = vmatmul.mubr.f32.gmra.mxu0 %v599
          %v988 = vpop.f32.mrf.mxu0
          %v989 = vadd.f32 %v850, %v988
          %v990 = vpop.f32.mrf.mxu0
          %991 = vmatprep.mubr.f32.mxu0 0.0
          %992 = vmatmul.mubr.f32.gmra.mxu0 %v600
          %v993 = vpop.f32.mrf.mxu0
          %v994 = vadd.f32 %v850, %v993
          %v995 = vpop.f32.mrf.mxu0
          %996 = vdwg.mxu0
          %v997 = vmax.f32 %v919, 0.0
          %v998 = vmax.f32 %v924, 0.0
          %v999 = vmax.f32 %v929, 0.0
          %v1000 = vmax.f32 %v934, 0.0
          %v1001 = vmax.f32 %v939, 0.0
          %v1002 = vmax.f32 %v944, 0.0
          %v1003 = vmax.f32 %v949, 0.0
          %v1004 = vmax.f32 %v954, 0.0
          %v1005 = vmax.f32 %v959, 0.0
          %v1006 = vmax.f32 %v964, 0.0
          %v1007 = vmax.f32 %v969, 0.0
          %v1008 = vmax.f32 %v974, 0.0
          %v1009 = vmax.f32 %v979, 0.0
          %v1010 = vmax.f32 %v984, 0.0
          %v1011 = vmax.f32 %v989, 0.0
          %v1012 = vmax.f32 %v994, 0.0
          %v1013 = vld [vmem:[#allocation19] sm:$0x1]
          %1014 = vmatprep.subr.mxu0 0.0
          %1015 = vmatpush1.xpose.msra.mxu0 %v1012
          %1016 = vmatprep.subr.mxu0 0.0
          %1017 = vmatpush1.xpose.msra.mxu0 %v1011
          %1018 = vmatprep.subr.mxu0 0.0
          %1019 = vmatpush1.xpose.msra.mxu0 %v1010
          %1020 = vmatprep.subr.mxu0 0.0
          %1021 = vmatpush1.xpose.msra.mxu0 %v1009
          %1022 = vmatprep.subr.mxu0 0.0
          %1023 = vmatpush1.xpose.msra.mxu0 %v1008
          %1024 = vmatprep.subr.mxu0 0.0
          %1025 = vmatpush1.xpose.msra.mxu0 %v1007
          %1026 = vmatprep.subr.mxu0 0.0
          %1027 = vmatpush1.xpose.msra.mxu0 %v1006
          %1028 = vmatprep.subr.mxu0 0.0
          %1029 = vmatpush1.xpose.msra.mxu0 %v1005
          %1030 = vmatprep.subr.mxu0 0.0
          %1031 = vmatpush1.xpose.msra.mxu0 %v1004
          %1032 = vmatprep.subr.mxu0 0.0
          %1033 = vmatpush1.xpose.msra.mxu0 %v1003
          %1034 = vmatprep.subr.mxu0 0.0
          %1035 = vmatpush1.xpose.msra.mxu0 %v1002
          %1036 = vmatprep.subr.mxu0 0.0
          %1037 = vmatpush1.xpose.msra.mxu0 %v1001
          %1038 = vmatprep.subr.mxu0 0.0
          %1039 = vmatpush1.xpose.msra.mxu0 %v1000
          %1040 = vmatprep.subr.mxu0 0.0
          %1041 = vmatpush1.xpose.msra.mxu0 %v999
          %1042 = vmatprep.subr.mxu0 0.0
          %1043 = vmatpush1.xpose.msra.mxu0 %v998
          %1044 = vmatprep.subr.mxu0 0.0
          %1045 = vmatpush1.xpose.msra.mxu0 %v997
          %1046 = vmatprep.subr.mxu0 0.0
          %1047 = vmatpush2.xpose.msra.mxu0 0.0
          %1048 = vmatprep.subr.mxu0 0.0
          %1049 = vmatpush2.xpose.msra.mxu0 0.0
          %1050 = vmatprep.subr.mxu0 0.0
          %1051 = vmatpush2.xpose.msra.mxu0 0.0
          %1052 = vmatprep.subr.mxu0 0.0
          %1053 = vmatpush2.xpose.msra.mxu0 0.0
          %1054 = vmatprep.subr.mxu0 0.0
          %1055 = vmatpush2.xpose.msra.mxu0 0.0
          %1056 = vmatprep.subr.mxu0 0.0
          %1057 = vmatpush2.xpose.msra.mxu0 0.0
          %1058 = vmatprep.subr.mxu0 0.0
          %1059 = vmatpush2.xpose.msra.mxu0 0.0
          %1060 = vmatprep.subr.mxu0 0.0
          %1061 = vmatpush2.xpose.msra.mxu0 0.0
          %1062 = vmatprep.subr.mxu0 0.0
          %1063 = vmatpush2.xpose.msra.mxu0 0.0
          %1064 = vmatprep.subr.mxu0 0.0
          %1065 = vmatpush2.xpose.msra.mxu0 0.0
          %1066 = vmatprep.subr.mxu0 0.0
          %1067 = vmatpush2.xpose.msra.mxu0 0.0
          %1068 = vmatprep.subr.mxu0 0.0
          %1069 = vmatpush2.xpose.msra.mxu0 0.0
          %1070 = vmatprep.subr.mxu0 0.0
          %1071 = vmatpush2.xpose.msra.mxu0 0.0
          %1072 = vmatprep.subr.mxu0 0.0
          %1073 = vmatpush2.xpose.msra.mxu0 0.0
          %1074 = vmatprep.subr.mxu0 0.0
          %1075 = vmatpush2.xpose.msra.mxu0 0.0
          %1076 = vmatprep.subr.mxu0 0.0
          %1077 = vmatpush2.xpose.msra.mxu0 0.0
          %1078 = vmatprep.mubr.f32.mxu0 0.0
          %1079 = vmatmul.mubr.f32.gmra.mxu0 %v1013
          %v1080 = vpop.f32.mrf.mxu0
          %v1081 = vadd.f32 0.0, %v1080
          %v1082 = vpop.f32.mrf.mxu0
          %1083 = vdwg.mxu0
          %1084 = vst [vmem:[#allocation4] sm:$0x1] %v1081
        $region104: #{tpu_custom_call.1} parent=63 // pred_fallthru
          _
        %v1085 = vld [vmem:[#allocation2] sm:$0xff]
        %v1086 = vld [vmem:[%s524] sm:$0xff]
        %v1087 = vld [vmem:[%s524 + $0x8] sm:$0xff]
        %v1088 = vld [vmem:[%s524 + $0x10] sm:$0xff]
        %v1089 = vld [vmem:[%s524 + $0x18] sm:$0xff]
        %v1090 = vld [vmem:[%s524 + $0x20] sm:$0xff]
        %v1091 = vld [vmem:[%s524 + $0x28] sm:$0xff]
        %v1092 = vld [vmem:[%s524 + $0x30] sm:$0xff]
        %v1093 = vld [vmem:[%s524 + $0x38] sm:$0xff]
        %v1094 = vld [vmem:[%s524 + $0x40] sm:$0xff]
        %v1095 = vld [vmem:[%s524 + $0x48] sm:$0xff]
        %v1096 = vld [vmem:[%s524 + $0x50] sm:$0xff]
        %v1097 = vld [vmem:[%s524 + $0x58] sm:$0xff]
        %v1098 = vld [vmem:[%s524 + $0x60] sm:$0xff]
        %v1099 = vld [vmem:[%s524 + $0x68] sm:$0xff]
        %v1100 = vld [vmem:[%s524 + $0x70] sm:$0xff]
        %v1101 = vld [vmem:[%s524 + $0x78] sm:$0xff]
        %1102 = vmatprep.subr.mxu0 0.0
        %1103 = vmatpush1.msra.mxu0 %v1101
        %1104 = vmatprep.subr.mxu0 0.0
        %1105 = vmatpush1.msra.mxu0 %v1100
        %1106 = vmatprep.subr.mxu0 0.0
        %1107 = vmatpush1.msra.mxu0 %v1099
        %1108 = vmatprep.subr.mxu0 0.0
        %1109 = vmatpush1.msra.mxu0 %v1098
        %1110 = vmatprep.subr.mxu0 0.0
        %1111 = vmatpush1.msra.mxu0 %v1097
        %1112 = vmatprep.subr.mxu0 0.0
        %1113 = vmatpush1.msra.mxu0 %v1096
        %1114 = vmatprep.subr.mxu0 0.0
        %1115 = vmatpush1.msra.mxu0 %v1095
        %1116 = vmatprep.subr.mxu0 0.0
        %1117 = vmatpush1.msra.mxu0 %v1094
        %1118 = vmatprep.subr.mxu0 0.0
        %1119 = vmatpush1.msra.mxu0 %v1093
        %1120 = vmatprep.subr.mxu0 0.0
        %1121 = vmatpush1.msra.mxu0 %v1092
        %1122 = vmatprep.subr.mxu0 0.0
        %1123 = vmatpush1.msra.mxu0 %v1091
        %1124 = vmatprep.subr.mxu0 0.0
        %1125 = vmatpush1.msra.mxu0 %v1090
        %1126 = vmatprep.subr.mxu0 0.0
        %1127 = vmatpush1.msra.mxu0 %v1089
        %1128 = vmatprep.subr.mxu0 0.0
        %1129 = vmatpush1.msra.mxu0 %v1088
        %1130 = vmatprep.subr.mxu0 0.0
        %1131 = vmatpush1.msra.mxu0 %v1087
        %1132 = vmatprep.subr.mxu0 0.0
        %1133 = vmatpush1.msra.mxu0 %v1086
        %1134 = vmatprep.subr.mxu0 0.0
        %1135 = vmatpush2.msra.mxu0 0.0
        %1136 = vmatprep.subr.mxu0 0.0
        %1137 = vmatpush2.msra.mxu0 0.0
        %1138 = vmatprep.subr.mxu0 0.0
        %1139 = vmatpush2.msra.mxu0 0.0
        %1140 = vmatprep.subr.mxu0 0.0
        %1141 = vmatpush2.msra.mxu0 0.0
        %1142 = vmatprep.subr.mxu0 0.0
        %1143 = vmatpush2.msra.mxu0 0.0
        %1144 = vmatprep.subr.mxu0 0.0
        %1145 = vmatpush2.msra.mxu0 0.0
        %1146 = vmatprep.subr.mxu0 0.0
        %1147 = vmatpush2.msra.mxu0 0.0
        %1148 = vmatprep.subr.mxu0 0.0
        %1149 = vmatpush2.msra.mxu0 0.0
        %1150 = vmatprep.subr.mxu0 0.0
        %1151 = vmatpush2.msra.mxu0 0.0
        %1152 = vmatprep.subr.mxu0 0.0
        %1153 = vmatpush2.msra.mxu0 0.0
        %1154 = vmatprep.subr.mxu0 0.0
        %1155 = vmatpush2.msra.mxu0 0.0
        %1156 = vmatprep.subr.mxu0 0.0
        %1157 = vmatpush2.msra.mxu0 0.0
        %1158 = vmatprep.subr.mxu0 0.0
        %1159 = vmatpush2.msra.mxu0 0.0
        %1160 = vmatprep.subr.mxu0 0.0
        %1161 = vmatpush2.msra.mxu0 0.0
        %1162 = vmatprep.subr.mxu0 0.0
        %1163 = vmatpush2.msra.mxu0 0.0
        %1164 = vmatprep.subr.mxu0 0.0
        %1165 = vmatpush2.msra.mxu0 0.0
        %1166 = vmatprep.mubr.f32.mxu0 0.0
        %1167 = vmatmul.mubr.f32.gmra.mxu0 %v1085
        %v1168 = vpop.f32.mrf.mxu0
        %v1169 = vadd.f32 0.0, %v1168
        %v1170 = vpop.f32.mrf.mxu0
        %1171 = vdwg.mxu0
        %v1172 = vld [vmem:[%s581] sm:$0x1]
        %v1174 = vlaneseq
        %v1175 = vshrl.u32 %v1174, 7
        %v1176 = vsub.s32 0, %v1175
        %v1177 = vrot.slane %v1172, %v1176
        %v1179 = vmul.f32 %v1085, %v1177
        %1180 = vadd.xlane.f32.xlu0 %v1179
        %v1181 = vpop.xlane.xlu0 %1180
        %v1182 = vld [vmem:[#allocation3] sm:$0xff]
        %v1183 = vadd.f32 %v1181, %v1182
        %s1184 = sld [smem:[#allocation22 + %s45]]
        %v1185 = vstv %s1184
        %v1186 = vadd.f32 %v1183, %v1185
        %v1187 = vld [vmem:[%s584] sm:$0x1]
        %v1188 = vld [vmem:[#allocation4] sm:$0x1]
        %1189 = vmatprep.subr.mxu0 0.0
        %1190 = vmatpush1.xpose.msra.mxu0 %v600
        %1191 = vmatprep.subr.mxu0 0.0
        %1192 = vmatpush1.xpose.msra.mxu0 %v599
        %1193 = vmatprep.subr.mxu0 0.0
        %1194 = vmatpush1.xpose.msra.mxu0 %v598
        %1195 = vmatprep.subr.mxu0 0.0
        %1196 = vmatpush1.xpose.msra.mxu0 %v597
        %1197 = vmatprep.subr.mxu0 0.0
        %1198 = vmatpush1.xpose.msra.mxu0 %v596
        %1199 = vmatprep.subr.mxu0 0.0
        %1200 = vmatpush1.xpose.msra.mxu0 %v595
        %1201 = vmatprep.subr.mxu0 0.0
        %1202 = vmatpush1.xpose.msra.mxu0 %v594
        %1203 = vmatprep.subr.mxu0 0.0
        %1204 = vmatpush1.xpose.msra.mxu0 %v593
        %1205 = vmatprep.subr.mxu0 0.0
        %1206 = vmatpush1.xpose.msra.mxu0 %v592
        %1207 = vmatprep.subr.mxu0 0.0
        %1208 = vmatpush1.xpose.msra.mxu0 %v591
        %1209 = vmatprep.subr.mxu0 0.0
        %1210 = vmatpush1.xpose.msra.mxu0 %v590
        %1211 = vmatprep.subr.mxu0 0.0
        %1212 = vmatpush1.xpose.msra.mxu0 %v589
        %1213 = vmatprep.subr.mxu0 0.0
        %1214 = vmatpush1.xpose.msra.mxu0 %v588
        %1215 = vmatprep.subr.mxu0 0.0
        %1216 = vmatpush1.xpose.msra.mxu0 %v587
        %1217 = vmatprep.subr.mxu0 0.0
        %1218 = vmatpush1.xpose.msra.mxu0 %v586
        %1219 = vmatprep.subr.mxu0 0.0
        %1220 = vmatpush1.xpose.msra.mxu0 %v585
        %1221 = vmatprep.subr.mxu0 0.0
        %1222 = vmatpush2.xpose.msra.mxu0 0.0
        %1223 = vmatprep.subr.mxu0 0.0
        %1224 = vmatpush2.xpose.msra.mxu0 0.0
        %1225 = vmatprep.subr.mxu0 0.0
        %1226 = vmatpush2.xpose.msra.mxu0 0.0
        %1227 = vmatprep.subr.mxu0 0.0
        %1228 = vmatpush2.xpose.msra.mxu0 0.0
        %1229 = vmatprep.subr.mxu0 0.0
        %1230 = vmatpush2.xpose.msra.mxu0 0.0
        %1231 = vmatprep.subr.mxu0 0.0
        %1232 = vmatpush2.xpose.msra.mxu0 0.0
        %1233 = vmatprep.subr.mxu0 0.0
        %1234 = vmatpush2.xpose.msra.mxu0 0.0
        %1235 = vmatprep.subr.mxu0 0.0
        %1236 = vmatpush2.xpose.msra.mxu0 0.0
        %1237 = vmatprep.subr.mxu0 0.0
        %1238 = vmatpush2.xpose.msra.mxu0 0.0
        %1239 = vmatprep.subr.mxu0 0.0
        %1240 = vmatpush2.xpose.msra.mxu0 0.0
        %1241 = vmatprep.subr.mxu0 0.0
        %1242 = vmatpush2.xpose.msra.mxu0 0.0
        %1243 = vmatprep.subr.mxu0 0.0
        %1244 = vmatpush2.xpose.msra.mxu0 0.0
        %1245 = vmatprep.subr.mxu0 0.0
        %1246 = vmatpush2.xpose.msra.mxu0 0.0
        %1247 = vmatprep.subr.mxu0 0.0
        %1248 = vmatpush2.xpose.msra.mxu0 0.0
        %1249 = vmatprep.subr.mxu0 0.0
        %1250 = vmatpush2.xpose.msra.mxu0 0.0
        %1251 = vmatprep.subr.mxu0 0.0
        %1252 = vmatpush2.xpose.msra.mxu0 0.0
        %1253 = vmatprep.mubr.f32.mxu0 0.0
        %1254 = vmatmul.mubr.f32.gmra.mxu0 %v1187
        %v1255 = vpop.f32.mrf.mxu0
        %v1256 = vadd.f32 %v1188, %v1255
        %v1257 = vpop.f32.mrf.mxu0
        %1258 = vdwg.mxu0
        %1260 = vset.pattern.permute.xlu0 0
        %1261 = vperm.xlu0 %1260, %v1186
        %v1262 = vpop.permute.xlu0 %1261
        %1264 = vmatprep.subr.mxu0 0.0
        %1265 = vmatpush1.xpose.msra.mxu0 %v600
        %1266 = vmatprep.subr.mxu0 0.0
        %1267 = vmatpush1.xpose.msra.mxu0 %v599
        %1268 = vmatprep.subr.mxu0 0.0
        %1269 = vmatpush1.xpose.msra.mxu0 %v598
        %1270 = vmatprep.subr.mxu0 0.0
        %1271 = vmatpush1.xpose.msra.mxu0 %v597
        %1272 = vmatprep.subr.mxu0 0.0
        %1273 = vmatpush1.xpose.msra.mxu0 %v596
        %1274 = vmatprep.subr.mxu0 0.0
        %1275 = vmatpush1.xpose.msra.mxu0 %v595
        %1276 = vmatprep.subr.mxu0 0.0
        %1277 = vmatpush1.xpose.msra.mxu0 %v594
        %1278 = vmatprep.subr.mxu0 0.0
        %1279 = vmatpush1.xpose.msra.mxu0 %v593
        %1280 = vmatprep.subr.mxu0 0.0
        %1281 = vmatpush1.xpose.msra.mxu0 %v592
        %1282 = vmatprep.subr.mxu0 0.0
        %1283 = vmatpush1.xpose.msra.mxu0 %v591
        %1284 = vmatprep.subr.mxu0 0.0
        %1285 = vmatpush1.xpose.msra.mxu0 %v590
        %1286 = vmatprep.subr.mxu0 0.0
        %1287 = vmatpush1.xpose.msra.mxu0 %v589
        %1288 = vmatprep.subr.mxu0 0.0
        %1289 = vmatpush1.xpose.msra.mxu0 %v588
        %1290 = vmatprep.subr.mxu0 0.0
        %1291 = vmatpush1.xpose.msra.mxu0 %v587
        %1292 = vmatprep.subr.mxu0 0.0
        %1293 = vmatpush1.xpose.msra.mxu0 %v586
        %1294 = vmatprep.subr.mxu0 0.0
        %1295 = vmatpush1.xpose.msra.mxu0 %v585
        %1296 = vmatprep.subr.mxu0 0.0
        %1297 = vmatpush2.xpose.msra.mxu0 0.0
        %1298 = vmatprep.subr.mxu0 0.0
        %1299 = vmatpush2.xpose.msra.mxu0 0.0
        %1300 = vmatprep.subr.mxu0 0.0
        %1301 = vmatpush2.xpose.msra.mxu0 0.0
        %1302 = vmatprep.subr.mxu0 0.0
        %1303 = vmatpush2.xpose.msra.mxu0 0.0
        %1304 = vmatprep.subr.mxu0 0.0
        %1305 = vmatpush2.xpose.msra.mxu0 0.0
        %1306 = vmatprep.subr.mxu0 0.0
        %1307 = vmatpush2.xpose.msra.mxu0 0.0
        %1308 = vmatprep.subr.mxu0 0.0
        %1309 = vmatpush2.xpose.msra.mxu0 0.0
        %1310 = vmatprep.subr.mxu0 0.0
        %1311 = vmatpush2.xpose.msra.mxu0 0.0
        %1312 = vmatprep.subr.mxu0 0.0
        %1313 = vmatpush2.xpose.msra.mxu0 0.0
        %1314 = vmatprep.subr.mxu0 0.0
        %1315 = vmatpush2.xpose.msra.mxu0 0.0
        %1316 = vmatprep.subr.mxu0 0.0
        %1317 = vmatpush2.xpose.msra.mxu0 0.0
        %1318 = vmatprep.subr.mxu0 0.0
        %1319 = vmatpush2.xpose.msra.mxu0 0.0
        %1320 = vmatprep.subr.mxu0 0.0
        %1321 = vmatpush2.xpose.msra.mxu0 0.0
        %1322 = vmatprep.subr.mxu0 0.0
        %1323 = vmatpush2.xpose.msra.mxu0 0.0
        %1324 = vmatprep.subr.mxu0 0.0
        %1325 = vmatpush2.xpose.msra.mxu0 0.0
        %1326 = vmatprep.subr.mxu0 0.0
        %1327 = vmatpush2.xpose.msra.mxu0 0.0
        %1328 = vmatprep.mubr.f32.mxu0 0.0
        %1329 = vmatmul.mubr.f32.gmra.mxu0 %v1169
        %v1330 = vpop.f32.mrf.mxu0
        %v1331 = vadd.f32 %v1262, %v1330
        %v1332 = vpop.f32.mrf.mxu0
        %1333 = vdwg.mxu0
        %v1334 = vlaneseq
        %v1335 = vshrl.u32 %v1334, 7
        %v1336 = vsub.s32 0, %v1335
        %v1337 = vrot.slane %v1256, %v1336
        %v1338 = vadd.f32 %v1331, %v1337
        %p1339 = scmp.eq.s32.totalorder %s45, 7
        %s1340 = scalar_select %p1339, 1, 0
        %v1341 = vstv %s1340
        %vm1342 = vcmp.eq.s32.totalorder %v1341, 1
        %v1343 = vsel %vm1342, 0.0, %v1338
        %1344 = vst [vmem:[%s578] sm:$0xff] %v1343
        %s1345 = sand.u32 %s313, 1
        %s1346 = scalar_lea.sflag [#allocation9], %s1345
        %s1347 = sand.u32 %s313, 1
        %s1348 = smul.addr %s1347, 8
        %s1349 = scalar_lea.vmem [#allocation23], %s1348
        // Predicated region
        $region105: #{tpu_custom_call.1} parent=63 // pred_check
          %p1350 = pneg %p323
        $region106: #{tpu_custom_call.1} parent=63 // pred_check_branch
          %1352 = sbr.rel (%p1350) target = $region108
        $region107: #{tpu_custom_call.1} parent=63 // pred_region
          %s1354 = ssub.s32 128, 128
          %1355 = vsyncadd %s1346, %s1354
          %s1356 = smul.addr %s44, 8
          %s1357 = sadd.s32 %s45, %s1356
          %s1358 = smul.addr %s1357, 128
          %s1359 = scalar_lea.hbm %s12, %s1358
          %s1361 = sshll.u32 %s1349, 4
          %s1362 = int_to_ptr.vmem [resolvable:$true] %s1361
          %1364 = dma.vmem_to_hbm [thread:$0]  %s1362, 128, %s1359, %s1346
        $region108: #{tpu_custom_call.1} parent=63 // pred_fallthru
          _
      $region64: #{tpu_custom_call.1} parent=5 // pred_fallthru
        _
      %p1365 = scmp.le.s32.totalorder 2, %s35
      // Predicated region
      $region109: #{tpu_custom_call.1} parent=5 // pred_check
        %p1366 = pneg %p1365
      $region110: #{tpu_custom_call.1} parent=5 // pred_check_branch
        %1368 = sbr.rel (%p1366) target = $region112
      $region111: #{tpu_custom_call.1} parent=5 // pred_region
        %s1369 = ssub.s32 %s35, 2
        // Predicated region
        $region113: #{tpu_custom_call.1} parent=111 // pred_check
          %p1370 = pneg %p329
        $region114: #{tpu_custom_call.1} parent=111 // pred_check_branch
          %1372 = sbr.rel (%p1370) target = $region116
        $region115: #{tpu_custom_call.1} parent=111 // pred_region
          %s1373 = sand.u32 %s314, 1
          %s1374 = scalar_lea.sflag [#allocation9], %s1373
          %s1375 = sand.u32 %s314, 1
          %s1376 = smul.addr %s1375, 8
          %s1377 = scalar_lea.vmem [#allocation23], %s1376
          %1378 = dma.done %s1374, 128
        $region116: #{tpu_custom_call.1} parent=111 // pred_fallthru
          _
      $region112: #{tpu_custom_call.1} parent=5 // pred_fallthru
        _
    $region6: #{tpu_custom_call.1} parent=1 // loop_footer
      %s39 = sadd.s32 1, %s35
    $region7: #{tpu_custom_call.1} parent=1 // loop_footer_branch
      %34 = sbr.rel target = $region3
    $region8: #{tpu_custom_call.1} parent=1 // loop_exit
      _
    %1379 = vsyncpa [#allocation8], 1
    %s1380 = scalar_lea.sflag [#allocation8], 1
    %1381 = vsyncpa %s1380, 1
    %1382 = vsyncpa [#allocation12], 1
    %1383 = vsyncpa [#allocation15], 1
    %1384 = vsyncpa [#allocation18], 1
    %1385 = vsyncpa [#allocation21], 1
    %s1386 = scalar_lea.sflag [#allocation21], 1
    %1387 = vsyncpa %s1386, 1
    %1388 = vsyncpa [#allocation9], 1
    %s1389 = scalar_lea.sflag [#allocation9], 1
    %1390 = vsyncpa %s1389, 1
    %1391 = vsyncpa [#allocation10], 1
    %s1392 = scalar_lea.sflag [#allocation10], 1
    %1393 = vsyncpa %s1392, 1

</llo_original>
